<compile_context>
chip_gen: v6e
topology: v6e:2x2x1
jax: 0.10.0
libtpu: 0.0.40
codegen_flags: <defaults>
</compile_context>

<pallas_src>
import jax
import jax.numpy as jnp
from jax.experimental import pallas as pl
from jax.experimental.pallas import tpu as pltpu

INPUT_DIM = 25
WIDTH = 100
OUT_DIM = 1
N_LAYERS = 7  # 6 hidden (ReLU) + 1 output (no activation)

LANE = 128
PAD_IN = 128   # 25  -> 128
PAD_HID = 128  # 100 -> 128
PAD_OUT = 128  # 1   -> 128  (lane-dense output store)


def mlp_kernel(x_ref, *refs):
    """refs = (w1, b1, w2, b2, ..., w7, b7, out_ref); all widths padded to 128.

    Weights / activations are in the compute dtype (f32 or bf16) and feed the
    MXU with f32 accumulation.  Biases are f32 and added to the f32 accumulator
    (implicit (1,128) broadcast), ReLU runs in f32 on the VPU, and activations
    are cast back to the compute dtype only as the next matmul input.
    """
    out_ref = refs[-1]
    param_refs = refs[:-1]
    compute_dtype = x_ref.dtype

    h = x_ref[...]
    for layer in range(N_LAYERS):
        w = param_refs[2 * layer][...]
        b = param_refs[2 * layer + 1][...]
        acc = jnp.dot(h, w, preferred_element_type=jnp.float32) + b
        if layer < N_LAYERS - 1:
            acc = jnp.maximum(acc, 0.0)          # ReLU (VPU, f32)
            h = acc.astype(compute_dtype)
        else:
            out_ref[...] = acc.astype(out_ref.dtype)


def _round_up(n, m):
    return (n + m - 1) // m * m


def init_params(key):
    """Deterministic init matching the PyTorch module's shapes.

    PyTorch Linear weights are (out, in); we store them transposed (in, out)
    so the kernel computes y = x @ W + b.  Biases are kept 2-D (1, out).
    """
    dims = [(INPUT_DIM, WIDTH)] + [(WIDTH, WIDTH)] * 5 + [(WIDTH, OUT_DIM)]
    params = []
    for i, (fan_in, fan_out) in enumerate(dims):
        kw, kb = jax.random.split(jax.random.fold_in(key, i))
        bound = 1.0 / (fan_in ** 0.5)
        w = jax.random.uniform(kw, (fan_in, fan_out), jnp.float32, -bound, bound)
        b = jax.random.uniform(kb, (1, fan_out), jnp.float32, -bound, bound)
        params.append((w, b))
    return params


def _pad_params(params, compute_dtype):
    """Zero-pad every weight to (128, 128) and every bias to (1, 128)."""
    padded = []
    for w, b in params:
        fi, fo = w.shape
        wp = jnp.pad(w, ((0, LANE - fi), (0, LANE - fo))).astype(compute_dtype)
        bp = jnp.pad(b, ((0, 0), (0, LANE - fo))).astype(jnp.float32)
        padded.append((wp, bp))
    return padded


def nn_forward(x, params, *, batch_tile=256, compute_dtype=jnp.float32):
    B, F = x.shape
    assert F == INPUT_DIM, F

    # Pad batch up to a multiple of the (128-aligned) tile, pad features to 128.
    B_pad = _round_up(max(B, batch_tile), batch_tile)
    xp = jnp.pad(x.astype(compute_dtype), ((0, B_pad - B), (0, PAD_IN - F)))

    padded = _pad_params(params, compute_dtype)

    grid = (B_pad // batch_tile,)
    in_specs = [pl.BlockSpec((batch_tile, PAD_IN), lambda i: (i, 0))]
    flat_args = [xp]
    for w, b in padded:
        # Whole weight / bias resident in VMEM for every batch tile.
        in_specs.append(pl.BlockSpec(w.shape, lambda i: (0, 0)))
        in_specs.append(pl.BlockSpec(b.shape, lambda i: (0, 0)))
        flat_args += [w, b]

    out_specs = pl.BlockSpec((batch_tile, PAD_OUT), lambda i: (i, 0))

    out = pl.pallas_call(
        mlp_kernel,
        out_shape=jax.ShapeDtypeStruct((B_pad, PAD_OUT), jnp.float32),
        grid=grid,
        in_specs=in_specs,
        out_specs=out_specs,
        compiler_params=pltpu.CompilerParams(
            dimension_semantics=("parallel",),
        ),
    )(*flat_args)

    return out[:B, :OUT_DIM]


def nn_forward_ref(x, params, compute_dtype=jnp.float32):
    """Pure-JAX reference mirroring the kernel's dtype handling."""
    h = x.astype(compute_dtype)
    out = None
    for i, (w, b) in enumerate(params):
        acc = jnp.dot(h, w.astype(compute_dtype),
                      preferred_element_type=jnp.float32) + b
        if i < N_LAYERS - 1:
            h = jnp.maximum(acc, 0.0).astype(compute_dtype)
        else:
            out = acc
    return out


if __name__ == "__main__":
    key = jax.random.PRNGKey(0)
    k_x, k_p = jax.random.split(key)

    B = 512  # 2 grid steps at the default batch_tile=256 (feeds both v7x TCs)
    x = jax.random.normal(k_x, (B, INPUT_DIM), dtype=jnp.float32)
    params = init_params(k_p)

    # f32 path (safe default on all generations, incl. v5e)
    out_f32 = jax.block_until_ready(
        nn_forward(x, params, batch_tile=256, compute_dtype=jnp.float32))
    ref_f32 = nn_forward_ref(x, params, jnp.float32)
    assert out_f32.shape == (B, OUT_DIM), out_f32.shape
    assert jnp.allclose(out_f32, ref_f32, atol=1e-3, rtol=1e-3), (
        float(jnp.max(jnp.abs(out_f32 - ref_f32)))
    )

    # bf16 MXU path (v6e/v7x fast path; f32 accumulation + f32 ReLU/bias)
    out_bf16 = jax.block_until_ready(
        nn_forward(x, params, batch_tile=256, compute_dtype=jnp.bfloat16))
    ref_bf16 = nn_forward_ref(x, params, jnp.bfloat16)
    assert out_bf16.shape == (B, OUT_DIM), out_bf16.shape
    assert jnp.allclose(out_bf16, ref_bf16, atol=5e-2, rtol=5e-2), (
        float(jnp.max(jnp.abs(out_bf16 - ref_bf16)))
    )

    print("KERNEL_OK")
</pallas_src>

<mosaic_0001>
module attributes {stable_mosaic.version = 11 : i64} {
  func.func @mlp_kernel(%arg0: i32, %arg1: memref<256x128xf32, #tpu.memory_space<vmem>>, %arg2: memref<128x128xf32, #tpu.memory_space<vmem>>, %arg3: memref<1x128xf32, #tpu.memory_space<vmem>>, %arg4: memref<128x128xf32, #tpu.memory_space<vmem>>, %arg5: memref<1x128xf32, #tpu.memory_space<vmem>>, %arg6: memref<128x128xf32, #tpu.memory_space<vmem>>, %arg7: memref<1x128xf32, #tpu.memory_space<vmem>>, %arg8: memref<128x128xf32, #tpu.memory_space<vmem>>, %arg9: memref<1x128xf32, #tpu.memory_space<vmem>>, %arg10: memref<128x128xf32, #tpu.memory_space<vmem>>, %arg11: memref<1x128xf32, #tpu.memory_space<vmem>>, %arg12: memref<128x128xf32, #tpu.memory_space<vmem>>, %arg13: memref<1x128xf32, #tpu.memory_space<vmem>>, %arg14: memref<128x128xf32, #tpu.memory_space<vmem>>, %arg15: memref<1x128xf32, #tpu.memory_space<vmem>>, %arg16: memref<256x128xf32, #tpu.memory_space<vmem>>) attributes {dimension_semantics = [#tpu.dimension_semantics<parallel>], iteration_bounds = array<i64: 2>, scalar_prefetch = 0 : i64, scratch_operands = 0 : i64, tpu.core_type = #tpu.core_type<tc>, window_params = [{transform_indices = @transform_0, window_bounds = array<i64: 256, 128>}, {pipeline_mode = #tpu.pipeline_mode<synchronous>, transform_indices = @transform_1, window_bounds = array<i64: 128, 128>}, {pipeline_mode = #tpu.pipeline_mode<synchronous>, transform_indices = @transform_2, window_bounds = array<i64: 1, 128>}, {pipeline_mode = #tpu.pipeline_mode<synchronous>, transform_indices = @transform_3, window_bounds = array<i64: 128, 128>}, {pipeline_mode = #tpu.pipeline_mode<synchronous>, transform_indices = @transform_4, window_bounds = array<i64: 1, 128>}, {pipeline_mode = #tpu.pipeline_mode<synchronous>, transform_indices = @transform_5, window_bounds = array<i64: 128, 128>}, {pipeline_mode = #tpu.pipeline_mode<synchronous>, transform_indices = @transform_6, window_bounds = array<i64: 1, 128>}, {pipeline_mode = #tpu.pipeline_mode<synchronous>, transform_indices = @transform_7, window_bounds = array<i64: 128, 128>}, {pipeline_mode = #tpu.pipeline_mode<synchronous>, transform_indices = @transform_8, window_bounds = array<i64: 1, 128>}, {pipeline_mode = #tpu.pipeline_mode<synchronous>, transform_indices = @transform_9, window_bounds = array<i64: 128, 128>}, {pipeline_mode = #tpu.pipeline_mode<synchronous>, transform_indices = @transform_10, window_bounds = array<i64: 1, 128>}, {pipeline_mode = #tpu.pipeline_mode<synchronous>, transform_indices = @transform_11, window_bounds = array<i64: 128, 128>}, {pipeline_mode = #tpu.pipeline_mode<synchronous>, transform_indices = @transform_12, window_bounds = array<i64: 1, 128>}, {pipeline_mode = #tpu.pipeline_mode<synchronous>, transform_indices = @transform_13, window_bounds = array<i64: 128, 128>}, {pipeline_mode = #tpu.pipeline_mode<synchronous>, transform_indices = @transform_14, window_bounds = array<i64: 1, 128>}, {transform_indices = @transform_15, window_bounds = array<i64: 256, 128>}]} {
    %c0 = arith.constant 0 : index
    %c0_0 = arith.constant 0 : index
    %0 = vector.load %arg1[%c0, %c0_0] : memref<256x128xf32, #tpu.memory_space<vmem>>, vector<256x128xf32>
    %c0_1 = arith.constant 0 : index
    %c0_2 = arith.constant 0 : index
    %1 = vector.load %arg2[%c0_1, %c0_2] : memref<128x128xf32, #tpu.memory_space<vmem>>, vector<128x128xf32>
    %c0_3 = arith.constant 0 : index
    %c0_4 = arith.constant 0 : index
    %2 = vector.load %arg3[%c0_3, %c0_4] : memref<1x128xf32, #tpu.memory_space<vmem>>, vector<1x128xf32>
    %cst = arith.constant dense<0.000000e+00> : vector<256x128xf32>
    %3 = tpu.matmul %0, %1, %cst {dimension_numbers = #tpu.dot_dimension_numbers<[1], [0], [0], [1], [0, 0, 1, 1], [], []>} : vector<256x128xf32>, vector<128x128xf32>, vector<256x128xf32> -> vector<256x128xf32>
    %4 = vector.broadcast %2 : vector<1x128xf32> to vector<256x128xf32>
    %5 = arith.addf %3, %4 : vector<256x128xf32>
    %cst_5 = arith.constant 0.000000e+00 : f32
    %6 = vector.broadcast %cst_5 : f32 to vector<256x128xf32>
    %7 = arith.maximumf %5, %6 : vector<256x128xf32>
    %c0_6 = arith.constant 0 : index
    %c0_7 = arith.constant 0 : index
    %8 = vector.load %arg4[%c0_6, %c0_7] : memref<128x128xf32, #tpu.memory_space<vmem>>, vector<128x128xf32>
    %c0_8 = arith.constant 0 : index
    %c0_9 = arith.constant 0 : index
    %9 = vector.load %arg5[%c0_8, %c0_9] : memref<1x128xf32, #tpu.memory_space<vmem>>, vector<1x128xf32>
    %cst_10 = arith.constant dense<0.000000e+00> : vector<256x128xf32>
    %10 = tpu.matmul %7, %8, %cst_10 {dimension_numbers = #tpu.dot_dimension_numbers<[1], [0], [0], [1], [0, 0, 1, 1], [], []>} : vector<256x128xf32>, vector<128x128xf32>, vector<256x128xf32> -> vector<256x128xf32>
    %11 = vector.broadcast %9 : vector<1x128xf32> to vector<256x128xf32>
    %12 = arith.addf %10, %11 : vector<256x128xf32>
    %cst_11 = arith.constant 0.000000e+00 : f32
    %13 = vector.broadcast %cst_11 : f32 to vector<256x128xf32>
    %14 = arith.maximumf %12, %13 : vector<256x128xf32>
    %c0_12 = arith.constant 0 : index
    %c0_13 = arith.constant 0 : index
    %15 = vector.load %arg6[%c0_12, %c0_13] : memref<128x128xf32, #tpu.memory_space<vmem>>, vector<128x128xf32>
    %c0_14 = arith.constant 0 : index
    %c0_15 = arith.constant 0 : index
    %16 = vector.load %arg7[%c0_14, %c0_15] : memref<1x128xf32, #tpu.memory_space<vmem>>, vector<1x128xf32>
    %cst_16 = arith.constant dense<0.000000e+00> : vector<256x128xf32>
    %17 = tpu.matmul %14, %15, %cst_16 {dimension_numbers = #tpu.dot_dimension_numbers<[1], [0], [0], [1], [0, 0, 1, 1], [], []>} : vector<256x128xf32>, vector<128x128xf32>, vector<256x128xf32> -> vector<256x128xf32>
    %18 = vector.broadcast %16 : vector<1x128xf32> to vector<256x128xf32>
    %19 = arith.addf %17, %18 : vector<256x128xf32>
    %cst_17 = arith.constant 0.000000e+00 : f32
    %20 = vector.broadcast %cst_17 : f32 to vector<256x128xf32>
    %21 = arith.maximumf %19, %20 : vector<256x128xf32>
    %c0_18 = arith.constant 0 : index
    %c0_19 = arith.constant 0 : index
    %22 = vector.load %arg8[%c0_18, %c0_19] : memref<128x128xf32, #tpu.memory_space<vmem>>, vector<128x128xf32>
    %c0_20 = arith.constant 0 : index
    %c0_21 = arith.constant 0 : index
    %23 = vector.load %arg9[%c0_20, %c0_21] : memref<1x128xf32, #tpu.memory_space<vmem>>, vector<1x128xf32>
    %cst_22 = arith.constant dense<0.000000e+00> : vector<256x128xf32>
    %24 = tpu.matmul %21, %22, %cst_22 {dimension_numbers = #tpu.dot_dimension_numbers<[1], [0], [0], [1], [0, 0, 1, 1], [], []>} : vector<256x128xf32>, vector<128x128xf32>, vector<256x128xf32> -> vector<256x128xf32>
    %25 = vector.broadcast %23 : vector<1x128xf32> to vector<256x128xf32>
    %26 = arith.addf %24, %25 : vector<256x128xf32>
    %cst_23 = arith.constant 0.000000e+00 : f32
    %27 = vector.broadcast %cst_23 : f32 to vector<256x128xf32>
    %28 = arith.maximumf %26, %27 : vector<256x128xf32>
    %c0_24 = arith.constant 0 : index
    %c0_25 = arith.constant 0 : index
    %29 = vector.load %arg10[%c0_24, %c0_25] : memref<128x128xf32, #tpu.memory_space<vmem>>, vector<128x128xf32>
    %c0_26 = arith.constant 0 : index
    %c0_27 = arith.constant 0 : index
    %30 = vector.load %arg11[%c0_26, %c0_27] : memref<1x128xf32, #tpu.memory_space<vmem>>, vector<1x128xf32>
    %cst_28 = arith.constant dense<0.000000e+00> : vector<256x128xf32>
    %31 = tpu.matmul %28, %29, %cst_28 {dimension_numbers = #tpu.dot_dimension_numbers<[1], [0], [0], [1], [0, 0, 1, 1], [], []>} : vector<256x128xf32>, vector<128x128xf32>, vector<256x128xf32> -> vector<256x128xf32>
    %32 = vector.broadcast %30 : vector<1x128xf32> to vector<256x128xf32>
    %33 = arith.addf %31, %32 : vector<256x128xf32>
    %cst_29 = arith.constant 0.000000e+00 : f32
    %34 = vector.broadcast %cst_29 : f32 to vector<256x128xf32>
    %35 = arith.maximumf %33, %34 : vector<256x128xf32>
    %c0_30 = arith.constant 0 : index
    %c0_31 = arith.constant 0 : index
    %36 = vector.load %arg12[%c0_30, %c0_31] : memref<128x128xf32, #tpu.memory_space<vmem>>, vector<128x128xf32>
    %c0_32 = arith.constant 0 : index
    %c0_33 = arith.constant 0 : index
    %37 = vector.load %arg13[%c0_32, %c0_33] : memref<1x128xf32, #tpu.memory_space<vmem>>, vector<1x128xf32>
    %cst_34 = arith.constant dense<0.000000e+00> : vector<256x128xf32>
    %38 = tpu.matmul %35, %36, %cst_34 {dimension_numbers = #tpu.dot_dimension_numbers<[1], [0], [0], [1], [0, 0, 1, 1], [], []>} : vector<256x128xf32>, vector<128x128xf32>, vector<256x128xf32> -> vector<256x128xf32>
    %39 = vector.broadcast %37 : vector<1x128xf32> to vector<256x128xf32>
    %40 = arith.addf %38, %39 : vector<256x128xf32>
    %cst_35 = arith.constant 0.000000e+00 : f32
    %41 = vector.broadcast %cst_35 : f32 to vector<256x128xf32>
    %42 = arith.maximumf %40, %41 : vector<256x128xf32>
    %c0_36 = arith.constant 0 : index
    %c0_37 = arith.constant 0 : index
    %43 = vector.load %arg14[%c0_36, %c0_37] : memref<128x128xf32, #tpu.memory_space<vmem>>, vector<128x128xf32>
    %c0_38 = arith.constant 0 : index
    %c0_39 = arith.constant 0 : index
    %44 = vector.load %arg15[%c0_38, %c0_39] : memref<1x128xf32, #tpu.memory_space<vmem>>, vector<1x128xf32>
    %cst_40 = arith.constant dense<0.000000e+00> : vector<256x128xf32>
    %45 = tpu.matmul %42, %43, %cst_40 {dimension_numbers = #tpu.dot_dimension_numbers<[1], [0], [0], [1], [0, 0, 1, 1], [], []>} : vector<256x128xf32>, vector<128x128xf32>, vector<256x128xf32> -> vector<256x128xf32>
    %46 = vector.broadcast %44 : vector<1x128xf32> to vector<256x128xf32>
    %47 = arith.addf %45, %46 : vector<256x128xf32>
    %c0_41 = arith.constant 0 : index
    %c0_42 = arith.constant 0 : index
    %48 = vector.load %arg16[%c0_41, %c0_42] : memref<256x128xf32, #tpu.memory_space<vmem>>, vector<256x128xf32>
    tpu.vector_store %arg16[%c0_41, %c0_42], %47 {strides = array<i32>} : memref<256x128xf32, #tpu.memory_space<vmem>>, vector<256x128xf32>,
    return
  }
  func.func @transform_0(%arg0: i32) -> (i32, i32) {
    %c0_i32 = arith.constant 0 : i32
    %c0_i32_0 = arith.constant 0 : i32
    return %arg0, %c0_i32 : i32, i32
  }
  func.func @transform_1(%arg0: i32) -> (i32, i32) {
    %c0_i32 = arith.constant 0 : i32
    %c0_i32_0 = arith.constant 0 : i32
    %c0_i32_1 = arith.constant 0 : i32
    return %c0_i32, %c0_i32_0 : i32, i32
  }
  func.func @transform_2(%arg0: i32) -> (i32, i32) {
    %c0_i32 = arith.constant 0 : i32
    %c0_i32_0 = arith.constant 0 : i32
    %c0_i32_1 = arith.constant 0 : i32
    return %c0_i32, %c0_i32_0 : i32, i32
  }
  func.func @transform_3(%arg0: i32) -> (i32, i32) {
    %c0_i32 = arith.constant 0 : i32
    %c0_i32_0 = arith.constant 0 : i32
    %c0_i32_1 = arith.constant 0 : i32
    return %c0_i32, %c0_i32_0 : i32, i32
  }
  func.func @transform_4(%arg0: i32) -> (i32, i32) {
    %c0_i32 = arith.constant 0 : i32
    %c0_i32_0 = arith.constant 0 : i32
    %c0_i32_1 = arith.constant 0 : i32
    return %c0_i32, %c0_i32_0 : i32, i32
  }
  func.func @transform_5(%arg0: i32) -> (i32, i32) {
    %c0_i32 = arith.constant 0 : i32
    %c0_i32_0 = arith.constant 0 : i32
    %c0_i32_1 = arith.constant 0 : i32
    return %c0_i32, %c0_i32_0 : i32, i32
  }
  func.func @transform_6(%arg0: i32) -> (i32, i32) {
    %c0_i32 = arith.constant 0 : i32
    %c0_i32_0 = arith.constant 0 : i32
    %c0_i32_1 = arith.constant 0 : i32
    return %c0_i32, %c0_i32_0 : i32, i32
  }
  func.func @transform_7(%arg0: i32) -> (i32, i32) {
    %c0_i32 = arith.constant 0 : i32
    %c0_i32_0 = arith.constant 0 : i32
    %c0_i32_1 = arith.constant 0 : i32
    return %c0_i32, %c0_i32_0 : i32, i32
  }
  func.func @transform_8(%arg0: i32) -> (i32, i32) {
    %c0_i32 = arith.constant 0 : i32
    %c0_i32_0 = arith.constant 0 : i32
    %c0_i32_1 = arith.constant 0 : i32
    return %c0_i32, %c0_i32_0 : i32, i32
  }
  func.func @transform_9(%arg0: i32) -> (i32, i32) {
    %c0_i32 = arith.constant 0 : i32
    %c0_i32_0 = arith.constant 0 : i32
    %c0_i32_1 = arith.constant 0 : i32
    return %c0_i32, %c0_i32_0 : i32, i32
  }
  func.func @transform_10(%arg0: i32) -> (i32, i32) {
    %c0_i32 = arith.constant 0 : i32
    %c0_i32_0 = arith.constant 0 : i32
    %c0_i32_1 = arith.constant 0 : i32
    return %c0_i32, %c0_i32_0 : i32, i32
  }
  func.func @transform_11(%arg0: i32) -> (i32, i32) {
    %c0_i32 = arith.constant 0 : i32
    %c0_i32_0 = arith.constant 0 : i32
    %c0_i32_1 = arith.constant 0 : i32
    return %c0_i32, %c0_i32_0 : i32, i32
  }
  func.func @transform_12(%arg0: i32) -> (i32, i32) {
    %c0_i32 = arith.constant 0 : i32
    %c0_i32_0 = arith.constant 0 : i32
    %c0_i32_1 = arith.constant 0 : i32
    return %c0_i32, %c0_i32_0 : i32, i32
  }
  func.func @transform_13(%arg0: i32) -> (i32, i32) {
    %c0_i32 = arith.constant 0 : i32
    %c0_i32_0 = arith.constant 0 : i32
    %c0_i32_1 = arith.constant 0 : i32
    return %c0_i32, %c0_i32_0 : i32, i32
  }
  func.func @transform_14(%arg0: i32) -> (i32, i32) {
    %c0_i32 = arith.constant 0 : i32
    %c0_i32_0 = arith.constant 0 : i32
    %c0_i32_1 = arith.constant 0 : i32
    return %c0_i32, %c0_i32_0 : i32, i32
  }
  func.func @transform_15(%arg0: i32) -> (i32, i32) {
    %c0_i32 = arith.constant 0 : i32
    %c0_i32_0 = arith.constant 0 : i32
    return %arg0, %c0_i32 : i32, i32
  }
}

</mosaic_0001>

<llo_original>
// kernel: tpu_custom_call.1
$region0: #{tpu_custom_call.1}
  #allocation0 [shape = 'u32[]', space=smem, size = 0x4, offset = 0x4, fixed_abs, tag = 'smem constant byte address 0x4 - core index']
  #allocation1 [shape = 'u32[144,128]{1,0:T(1,128)}', space=vmem, size = 0x12000, scoped, tag = 'internal scratch']
  %s0 = inlined_call_operand.hbm [shape: f32[512,128], index: 0, kind: input, shape index: {}]
  %s1 = inlined_call_operand.hbm [shape: f32[128,128], index: 1, kind: input, shape index: {}]
  %s2 = inlined_call_operand.vmem [shape: f32[1,128], index: 2, kind: input, shape index: {}]
  %s3 = inlined_call_operand.hbm [shape: f32[128,128], index: 3, kind: input, shape index: {}]
  %s4 = inlined_call_operand.vmem [shape: f32[1,128], index: 4, kind: input, shape index: {}]
  %s5 = inlined_call_operand.hbm [shape: f32[128,128], index: 5, kind: input, shape index: {}]
  %s6 = inlined_call_operand.vmem [shape: f32[1,128], index: 6, kind: input, shape index: {}]
  %s7 = inlined_call_operand.hbm [shape: f32[128,128], index: 7, kind: input, shape index: {}]
  %s8 = inlined_call_operand.vmem [shape: f32[1,128], index: 8, kind: input, shape index: {}]
  %s9 = inlined_call_operand.hbm [shape: f32[128,128], index: 9, kind: input, shape index: {}]
  %s10 = inlined_call_operand.vmem [shape: f32[1,128], index: 10, kind: input, shape index: {}]
  %s11 = inlined_call_operand.hbm [shape: f32[128,128], index: 11, kind: input, shape index: {}]
  %s12 = inlined_call_operand.vmem [shape: f32[1,128], index: 12, kind: input, shape index: {}]
  %s13 = inlined_call_operand.hbm [shape: f32[128,128], index: 13, kind: input, shape index: {}]
  %s14 = inlined_call_operand.vmem [shape: f32[1,128], index: 14, kind: input, shape index: {}]
  %s15 = inlined_call_operand.hbm [shape: f32[512,128], index: 15, kind: output, shape index: {}]
  %s16 = sld [smem:[#allocation0]]
  $region125: #{tpu_custom_call.1} parent=0
    _
  %s18 = ssub.s32 1, %s16
  %s19 = scalar_select 0, %s18, %s16
  $region1: #{tpu_custom_call.1} parent=0
    #allocation2 [shape = 'u8[262144]{0}', space=vmem, size = 0x40000, scoped, tag = 'input window, operand 0']
    #allocation3 [shape = 's32[2]{0}', space=sflag, size = 0x8, scoped, tag = 'scoped memory for tpu_custom_call.1']
    #allocation4 [shape = 's32[2]{0}', space=sflag, size = 0x8, scoped, tag = 'scoped memory for tpu_custom_call.1']
    #allocation5 [shape = 'u8[65536]{0}', space=vmem, size = 0x10000, scoped, tag = 'input window, operand 1, single buffered']
    #allocation6 [shape = 's32[1]{0}', space=sflag, size = 0x4, scoped, tag = 'scoped memory for tpu_custom_call.1']
    #allocation7 [shape = 'u8[65536]{0}', space=vmem, size = 0x10000, scoped, tag = 'input window, operand 3, single buffered']
    #allocation8 [shape = 'u8[65536]{0}', space=vmem, size = 0x10000, scoped, tag = 'input window, operand 5, single buffered']
    #allocation9 [shape = 's32[1]{0}', space=sflag, size = 0x4, scoped, tag = 'scoped memory for tpu_custom_call.1']
    #allocation10 [shape = 'u8[65536]{0}', space=vmem, size = 0x10000, scoped, tag = 'input window, operand 7, single buffered']
    #allocation11 [shape = 'u8[65536]{0}', space=vmem, size = 0x10000, scoped, tag = 'input window, operand 9, single buffered']
    #allocation12 [shape = 's32[1]{0}', space=sflag, size = 0x4, scoped, tag = 'scoped memory for tpu_custom_call.1']
    #allocation13 [shape = 'u8[65536]{0}', space=vmem, size = 0x10000, scoped, tag = 'input window, operand 11, single buffered']
    #allocation14 [shape = 'u8[65536]{0}', space=vmem, size = 0x10000, scoped, tag = 'input window, operand 13, single buffered']
    #allocation15 [shape = 's32[1]{0}', space=sflag, size = 0x4, scoped, tag = 'scoped memory for tpu_custom_call.1']
    #allocation16 [shape = 'u8[262144]{0}', space=vmem, size = 0x40000, scoped, tag = 'output window, operand 0']
    %20 = vsyncpa [#allocation3], 0
    %s21 = scalar_lea.sflag [#allocation3], 1
    %22 = vsyncpa %s21, 0
    %23 = vsyncpa [#allocation6], 0
    %24 = vsyncpa [#allocation9], 0
    %25 = vsyncpa [#allocation12], 0
    %26 = vsyncpa [#allocation15], 0
    %27 = vsyncpa [#allocation4], 0
    %s28 = scalar_lea.sflag [#allocation4], 1
    %29 = vsyncpa %s28, 0
    loop: start=0, step=1, limit=4
    $region2: #{tpu_custom_call.1} parent=1 // loop_pre_header
      _
    $region3: #{tpu_custom_call.1} parent=1 // loop_header
      %s31 = sphi 0, %s35
      %p32 = scmp.ge.s32.totalorder %s31, 4
      %s41 = sphi 0, %s43
      %s44 = sphi 0, %s41
      %s45 = sphi 0, %s44
      %s61 = sphi 0, %s45
      %s65 = sphi 0, %s65
      %s67 = sphi 0, %s65
      %s68 = sphi 0, %s67
      %s82 = sphi 0, %s68
      %s86 = sphi 0, %s86
      %s88 = sphi 0, %s86
      %s89 = sphi 0, %s88
      %s103 = sphi 0, %s89
      %s107 = sphi 0, %s107
      %s109 = sphi 0, %s107
      %s110 = sphi 0, %s109
      %s124 = sphi 0, %s110
      %s128 = sphi 0, %s128
      %s130 = sphi 0, %s128
      %s131 = sphi 0, %s130
      %s145 = sphi 0, %s131
      %s149 = sphi 0, %s149
      %s151 = sphi 0, %s149
      %s152 = sphi 0, %s151
      %s166 = sphi 0, %s152
      %s170 = sphi 0, %s170
      %s172 = sphi 0, %s170
      %s173 = sphi 0, %s172
      %s187 = sphi 0, %s173
      %s191 = sphi 0, %s191
      %s193 = sphi 0, %s191
      %s194 = sphi 0, %s193
      %s208 = sphi 0, %s194
      %s212 = sphi 0, %s212
      %s214 = sphi 0, %s212
      %s215 = sphi 0, %s214
      %s229 = sphi 0, %s215
      %s233 = sphi 0, %s233
      %s235 = sphi 0, %s233
      %s236 = sphi 0, %s235
      %s250 = sphi 0, %s236
      %s254 = sphi 0, %s254
      %s256 = sphi 0, %s254
      %s257 = sphi 0, %s256
      %s271 = sphi 0, %s257
      %s275 = sphi 0, %s275
      %s277 = sphi 0, %s275
      %s278 = sphi 0, %s277
      %s292 = sphi 0, %s278
      %s296 = sphi 0, %s296
      %s298 = sphi 0, %s296
      %s299 = sphi 0, %s298
      %s313 = sphi 0, %s299
      %s317 = sphi 0, %s317
      %s319 = sphi 0, %s317
      %s320 = sphi 0, %s319
      %s334 = sphi 0, %s320
      %s338 = sphi 0, %s338
      %s340 = sphi 0, %s338
      %s341 = sphi 0, %s340
      %s355 = sphi 0, %s341
      %s361 = sphi 0, %s363
      %s364 = sphi 0, %s361
      %s365 = sphi 0, %s364
      %s381 = sphi 0, %s365
    $region4: #{tpu_custom_call.1} parent=1 // loop_header_branch
      %34 = sbr.rel (%p32) target = $region8
    $region5: #{tpu_custom_call.1} parent=1 // loop_body
      %s36 = ssub.s32 %s31, 1
      %s37 = ssub.s32 %s31, 2
      %s38 = sadd.s32 %s31, 1
      %s39 = ssub.s32 %s31, %s38
      %p40 = scmp.eq.s32.totalorder %s39, 0
      %s42 = sadd.s32 %s41, 1
      %s43 = scalar_select %p40, %s41, %s42
      %p46 = pneg %p40
      %p47 = scmp.eq.s32.totalorder %s31, 1
      %p48 = por %p46, %p47
      %p49 = scmp.ne.s32.totalorder %s41, %s44
      %p50 = scmp.eq.s32.totalorder %s31, 0
      %p51 = por %p49, %p50
      %p52 = scmp.ne.s32.totalorder %s41, %s44
      %p53 = scmp.eq.s32.totalorder %s36, 1
      %p54 = por %p52, %p53
      %p55 = scmp.ne.s32.totalorder %s44, %s45
      %p56 = scmp.eq.s32.totalorder %s36, 0
      %p57 = por %p55, %p56
      %p58 = scmp.ne.s32.totalorder %s44, %s45
      %p59 = scmp.eq.s32.totalorder %s37, 1
      %p60 = por %p58, %p59
      %p62 = scmp.ne.s32.totalorder %s45, %s61
      %p63 = scmp.eq.s32.totalorder %s37, 0
      %p64 = por %p62, %p63
      %s66 = sadd.s32 %s65, 1
      %p69 = scmp.eq.s32.totalorder %s31, 1
      %p70 = scmp.ne.s32.totalorder %s65, %s67
      %p71 = scmp.eq.s32.totalorder %s31, 0
      %p72 = por %p70, %p71
      %p73 = scmp.ne.s32.totalorder %s65, %s67
      %p74 = scmp.eq.s32.totalorder %s36, 1
      %p75 = por %p73, %p74
      %p76 = scmp.ne.s32.totalorder %s67, %s68
      %p77 = scmp.eq.s32.totalorder %s36, 0
      %p78 = por %p76, %p77
      %p79 = scmp.ne.s32.totalorder %s67, %s68
      %p80 = scmp.eq.s32.totalorder %s37, 1
      %p81 = por %p79, %p80
      %p83 = scmp.ne.s32.totalorder %s68, %s82
      %p84 = scmp.eq.s32.totalorder %s37, 0
      %p85 = por %p83, %p84
      %s87 = sadd.s32 %s86, 1
      %p90 = scmp.eq.s32.totalorder %s31, 1
      %p91 = scmp.ne.s32.totalorder %s86, %s88
      %p92 = scmp.eq.s32.totalorder %s31, 0
      %p93 = por %p91, %p92
      %p94 = scmp.ne.s32.totalorder %s86, %s88
      %p95 = scmp.eq.s32.totalorder %s36, 1
      %p96 = por %p94, %p95
      %p97 = scmp.ne.s32.totalorder %s88, %s89
      %p98 = scmp.eq.s32.totalorder %s36, 0
      %p99 = por %p97, %p98
      %p100 = scmp.ne.s32.totalorder %s88, %s89
      %p101 = scmp.eq.s32.totalorder %s37, 1
      %p102 = por %p100, %p101
      %p104 = scmp.ne.s32.totalorder %s89, %s103
      %p105 = scmp.eq.s32.totalorder %s37, 0
      %p106 = por %p104, %p105
      %s108 = sadd.s32 %s107, 1
      %p111 = scmp.eq.s32.totalorder %s31, 1
      %p112 = scmp.ne.s32.totalorder %s107, %s109
      %p113 = scmp.eq.s32.totalorder %s31, 0
      %p114 = por %p112, %p113
      %p115 = scmp.ne.s32.totalorder %s107, %s109
      %p116 = scmp.eq.s32.totalorder %s36, 1
      %p117 = por %p115, %p116
      %p118 = scmp.ne.s32.totalorder %s109, %s110
      %p119 = scmp.eq.s32.totalorder %s36, 0
      %p120 = por %p118, %p119
      %p121 = scmp.ne.s32.totalorder %s109, %s110
      %p122 = scmp.eq.s32.totalorder %s37, 1
      %p123 = por %p121, %p122
      %p125 = scmp.ne.s32.totalorder %s110, %s124
      %p126 = scmp.eq.s32.totalorder %s37, 0
      %p127 = por %p125, %p126
      %s129 = sadd.s32 %s128, 1
      %p132 = scmp.eq.s32.totalorder %s31, 1
      %p133 = scmp.ne.s32.totalorder %s128, %s130
      %p134 = scmp.eq.s32.totalorder %s31, 0
      %p135 = por %p133, %p134
      %p136 = scmp.ne.s32.totalorder %s128, %s130
      %p137 = scmp.eq.s32.totalorder %s36, 1
      %p138 = por %p136, %p137
      %p139 = scmp.ne.s32.totalorder %s130, %s131
      %p140 = scmp.eq.s32.totalorder %s36, 0
      %p141 = por %p139, %p140
      %p142 = scmp.ne.s32.totalorder %s130, %s131
      %p143 = scmp.eq.s32.totalorder %s37, 1
      %p144 = por %p142, %p143
      %p146 = scmp.ne.s32.totalorder %s131, %s145
      %p147 = scmp.eq.s32.totalorder %s37, 0
      %p148 = por %p146, %p147
      %s150 = sadd.s32 %s149, 1
      %p153 = scmp.eq.s32.totalorder %s31, 1
      %p154 = scmp.ne.s32.totalorder %s149, %s151
      %p155 = scmp.eq.s32.totalorder %s31, 0
      %p156 = por %p154, %p155
      %p157 = scmp.ne.s32.totalorder %s149, %s151
      %p158 = scmp.eq.s32.totalorder %s36, 1
      %p159 = por %p157, %p158
      %p160 = scmp.ne.s32.totalorder %s151, %s152
      %p161 = scmp.eq.s32.totalorder %s36, 0
      %p162 = por %p160, %p161
      %p163 = scmp.ne.s32.totalorder %s151, %s152
      %p164 = scmp.eq.s32.totalorder %s37, 1
      %p165 = por %p163, %p164
      %p167 = scmp.ne.s32.totalorder %s152, %s166
      %p168 = scmp.eq.s32.totalorder %s37, 0
      %p169 = por %p167, %p168
      %s171 = sadd.s32 %s170, 1
      %p174 = scmp.eq.s32.totalorder %s31, 1
      %p175 = scmp.ne.s32.totalorder %s170, %s172
      %p176 = scmp.eq.s32.totalorder %s31, 0
      %p177 = por %p175, %p176
      %p178 = scmp.ne.s32.totalorder %s170, %s172
      %p179 = scmp.eq.s32.totalorder %s36, 1
      %p180 = por %p178, %p179
      %p181 = scmp.ne.s32.totalorder %s172, %s173
      %p182 = scmp.eq.s32.totalorder %s36, 0
      %p183 = por %p181, %p182
      %p184 = scmp.ne.s32.totalorder %s172, %s173
      %p185 = scmp.eq.s32.totalorder %s37, 1
      %p186 = por %p184, %p185
      %p188 = scmp.ne.s32.totalorder %s173, %s187
      %p189 = scmp.eq.s32.totalorder %s37, 0
      %p190 = por %p188, %p189
      %s192 = sadd.s32 %s191, 1
      %p195 = scmp.eq.s32.totalorder %s31, 1
      %p196 = scmp.ne.s32.totalorder %s191, %s193
      %p197 = scmp.eq.s32.totalorder %s31, 0
      %p198 = por %p196, %p197
      %p199 = scmp.ne.s32.totalorder %s191, %s193
      %p200 = scmp.eq.s32.totalorder %s36, 1
      %p201 = por %p199, %p200
      %p202 = scmp.ne.s32.totalorder %s193, %s194
      %p203 = scmp.eq.s32.totalorder %s36, 0
      %p204 = por %p202, %p203
      %p205 = scmp.ne.s32.totalorder %s193, %s194
      %p206 = scmp.eq.s32.totalorder %s37, 1
      %p207 = por %p205, %p206
      %p209 = scmp.ne.s32.totalorder %s194, %s208
      %p210 = scmp.eq.s32.totalorder %s37, 0
      %p211 = por %p209, %p210
      %s213 = sadd.s32 %s212, 1
      %p216 = scmp.eq.s32.totalorder %s31, 1
      %p217 = scmp.ne.s32.totalorder %s212, %s214
      %p218 = scmp.eq.s32.totalorder %s31, 0
      %p219 = por %p217, %p218
      %p220 = scmp.ne.s32.totalorder %s212, %s214
      %p221 = scmp.eq.s32.totalorder %s36, 1
      %p222 = por %p220, %p221
      %p223 = scmp.ne.s32.totalorder %s214, %s215
      %p224 = scmp.eq.s32.totalorder %s36, 0
      %p225 = por %p223, %p224
      %p226 = scmp.ne.s32.totalorder %s214, %s215
      %p227 = scmp.eq.s32.totalorder %s37, 1
      %p228 = por %p226, %p227
      %p230 = scmp.ne.s32.totalorder %s215, %s229
      %p231 = scmp.eq.s32.totalorder %s37, 0
      %p232 = por %p230, %p231
      %s234 = sadd.s32 %s233, 1
      %p237 = scmp.eq.s32.totalorder %s31, 1
      %p238 = scmp.ne.s32.totalorder %s233, %s235
      %p239 = scmp.eq.s32.totalorder %s31, 0
      %p240 = por %p238, %p239
      %p241 = scmp.ne.s32.totalorder %s233, %s235
      %p242 = scmp.eq.s32.totalorder %s36, 1
      %p243 = por %p241, %p242
      %p244 = scmp.ne.s32.totalorder %s235, %s236
      %p245 = scmp.eq.s32.totalorder %s36, 0
      %p246 = por %p244, %p245
      %p247 = scmp.ne.s32.totalorder %s235, %s236
      %p248 = scmp.eq.s32.totalorder %s37, 1
      %p249 = por %p247, %p248
      %p251 = scmp.ne.s32.totalorder %s236, %s250
      %p252 = scmp.eq.s32.totalorder %s37, 0
      %p253 = por %p251, %p252
      %s255 = sadd.s32 %s254, 1
      %p258 = scmp.eq.s32.totalorder %s31, 1
      %p259 = scmp.ne.s32.totalorder %s254, %s256
      %p260 = scmp.eq.s32.totalorder %s31, 0
      %p261 = por %p259, %p260
      %p262 = scmp.ne.s32.totalorder %s254, %s256
      %p263 = scmp.eq.s32.totalorder %s36, 1
      %p264 = por %p262, %p263
      %p265 = scmp.ne.s32.totalorder %s256, %s257
      %p266 = scmp.eq.s32.totalorder %s36, 0
      %p267 = por %p265, %p266
      %p268 = scmp.ne.s32.totalorder %s256, %s257
      %p269 = scmp.eq.s32.totalorder %s37, 1
      %p270 = por %p268, %p269
      %p272 = scmp.ne.s32.totalorder %s257, %s271
      %p273 = scmp.eq.s32.totalorder %s37, 0
      %p274 = por %p272, %p273
      %s276 = sadd.s32 %s275, 1
      %p279 = scmp.eq.s32.totalorder %s31, 1
      %p280 = scmp.ne.s32.totalorder %s275, %s277
      %p281 = scmp.eq.s32.totalorder %s31, 0
      %p282 = por %p280, %p281
      %p283 = scmp.ne.s32.totalorder %s275, %s277
      %p284 = scmp.eq.s32.totalorder %s36, 1
      %p285 = por %p283, %p284
      %p286 = scmp.ne.s32.totalorder %s277, %s278
      %p287 = scmp.eq.s32.totalorder %s36, 0
      %p288 = por %p286, %p287
      %p289 = scmp.ne.s32.totalorder %s277, %s278
      %p290 = scmp.eq.s32.totalorder %s37, 1
      %p291 = por %p289, %p290
      %p293 = scmp.ne.s32.totalorder %s278, %s292
      %p294 = scmp.eq.s32.totalorder %s37, 0
      %p295 = por %p293, %p294
      %s297 = sadd.s32 %s296, 1
      %p300 = scmp.eq.s32.totalorder %s31, 1
      %p301 = scmp.ne.s32.totalorder %s296, %s298
      %p302 = scmp.eq.s32.totalorder %s31, 0
      %p303 = por %p301, %p302
      %p304 = scmp.ne.s32.totalorder %s296, %s298
      %p305 = scmp.eq.s32.totalorder %s36, 1
      %p306 = por %p304, %p305
      %p307 = scmp.ne.s32.totalorder %s298, %s299
      %p308 = scmp.eq.s32.totalorder %s36, 0
      %p309 = por %p307, %p308
      %p310 = scmp.ne.s32.totalorder %s298, %s299
      %p311 = scmp.eq.s32.totalorder %s37, 1
      %p312 = por %p310, %p311
      %p314 = scmp.ne.s32.totalorder %s299, %s313
      %p315 = scmp.eq.s32.totalorder %s37, 0
      %p316 = por %p314, %p315
      %s318 = sadd.s32 %s317, 1
      %p321 = scmp.eq.s32.totalorder %s31, 1
      %p322 = scmp.ne.s32.totalorder %s317, %s319
      %p323 = scmp.eq.s32.totalorder %s31, 0
      %p324 = por %p322, %p323
      %p325 = scmp.ne.s32.totalorder %s317, %s319
      %p326 = scmp.eq.s32.totalorder %s36, 1
      %p327 = por %p325, %p326
      %p328 = scmp.ne.s32.totalorder %s319, %s320
      %p329 = scmp.eq.s32.totalorder %s36, 0
      %p330 = por %p328, %p329
      %p331 = scmp.ne.s32.totalorder %s319, %s320
      %p332 = scmp.eq.s32.totalorder %s37, 1
      %p333 = por %p331, %p332
      %p335 = scmp.ne.s32.totalorder %s320, %s334
      %p336 = scmp.eq.s32.totalorder %s37, 0
      %p337 = por %p335, %p336
      %s339 = sadd.s32 %s338, 1
      %p342 = scmp.eq.s32.totalorder %s31, 1
      %p343 = scmp.ne.s32.totalorder %s338, %s340
      %p344 = scmp.eq.s32.totalorder %s31, 0
      %p345 = por %p343, %p344
      %p346 = scmp.ne.s32.totalorder %s338, %s340
      %p347 = scmp.eq.s32.totalorder %s36, 1
      %p348 = por %p346, %p347
      %p349 = scmp.ne.s32.totalorder %s340, %s341
      %p350 = scmp.eq.s32.totalorder %s36, 0
      %p351 = por %p349, %p350
      %p352 = scmp.ne.s32.totalorder %s340, %s341
      %p353 = scmp.eq.s32.totalorder %s37, 1
      %p354 = por %p352, %p353
      %p356 = scmp.ne.s32.totalorder %s341, %s355
      %p357 = scmp.eq.s32.totalorder %s37, 0
      %p358 = por %p356, %p357
      %s359 = ssub.s32 %s31, %s38
      %p360 = scmp.eq.s32.totalorder %s359, 0
      %s362 = sadd.s32 %s361, 1
      %s363 = scalar_select %p360, %s361, %s362
      %p366 = pneg %p360
      %p367 = scmp.eq.s32.totalorder %s31, 1
      %p368 = por %p366, %p367
      %p369 = scmp.ne.s32.totalorder %s361, %s364
      %p370 = scmp.eq.s32.totalorder %s31, 0
      %p371 = por %p369, %p370
      %p372 = scmp.ne.s32.totalorder %s361, %s364
      %p373 = scmp.eq.s32.totalorder %s36, 1
      %p374 = por %p372, %p373
      %p375 = scmp.ne.s32.totalorder %s364, %s365
      %p376 = scmp.eq.s32.totalorder %s36, 0
      %p377 = por %p375, %p376
      %p378 = scmp.ne.s32.totalorder %s364, %s365
      %p379 = scmp.eq.s32.totalorder %s37, 1
      %p380 = por %p378, %p379
      %p382 = scmp.ne.s32.totalorder %s365, %s381
      %p383 = scmp.eq.s32.totalorder %s37, 0
      %p384 = por %p382, %p383
      %p385 = scmp.le.s32.totalorder 1, %s31
      %p386 = scmp.lt.s32.totalorder %s31, 3
      %p387 = pnand %p385, %p386
      %p388 = pneg %p387
      // Predicated region
      $region9: #{tpu_custom_call.1} parent=5 // pred_check
        _
      $region10: #{tpu_custom_call.1} parent=5 // pred_check_branch
        %390 = sbr.rel (%p387) target = $region12
      $region11: #{tpu_custom_call.1} parent=5 // pred_region
        %s391 = ssub.s32 %s31, 1
        // Predicated region
        $region13: #{tpu_custom_call.1} parent=11 // pred_check
          %p392 = pneg %p78
        $region14: #{tpu_custom_call.1} parent=11 // pred_check_branch
          %394 = sbr.rel (%p392) target = $region16
        $region15: #{tpu_custom_call.1} parent=11 // pred_region
          %s396 = ssub.s32 2048, 2048
          %397 = vsyncadd [#allocation6], %s396
          %s398 = sshll.u32 [#allocation5], 4
          %s399 = int_to_ptr.vmem [resolvable:$true] %s398
          %404 = dma.hbm_to_vmem [thread:$0]  %s1, 2048, %s399, [#allocation6], 128, 128, 8
        $region16: #{tpu_custom_call.1} parent=11 // pred_fallthru
          _
        // Predicated region
        $region17: #{tpu_custom_call.1} parent=11 // pred_check
          %p405 = pneg %p99
        $region18: #{tpu_custom_call.1} parent=11 // pred_check_branch
          %407 = sbr.rel (%p405) target = $region20
        $region19: #{tpu_custom_call.1} parent=11 // pred_region
          _
        $region20: #{tpu_custom_call.1} parent=11 // pred_fallthru
          _
        // Predicated region
        $region21: #{tpu_custom_call.1} parent=11 // pred_check
          %p408 = pneg %p120
        $region22: #{tpu_custom_call.1} parent=11 // pred_check_branch
          %410 = sbr.rel (%p408) target = $region24
        $region23: #{tpu_custom_call.1} parent=11 // pred_region
          %s412 = ssub.s32 2048, 2048
          %413 = vsyncadd [#allocation6], %s412
          %s414 = sshll.u32 [#allocation7], 4
          %s415 = int_to_ptr.vmem [resolvable:$true] %s414
          %420 = dma.hbm_to_vmem [thread:$0]  %s3, 2048, %s415, [#allocation6], 128, 128, 8
        $region24: #{tpu_custom_call.1} parent=11 // pred_fallthru
          _
        // Predicated region
        $region25: #{tpu_custom_call.1} parent=11 // pred_check
          %p421 = pneg %p141
        $region26: #{tpu_custom_call.1} parent=11 // pred_check_branch
          %423 = sbr.rel (%p421) target = $region28
        $region27: #{tpu_custom_call.1} parent=11 // pred_region
          _
        $region28: #{tpu_custom_call.1} parent=11 // pred_fallthru
          _
        // Predicated region
        $region29: #{tpu_custom_call.1} parent=11 // pred_check
          %p424 = pneg %p162
        $region30: #{tpu_custom_call.1} parent=11 // pred_check_branch
          %426 = sbr.rel (%p424) target = $region32
        $region31: #{tpu_custom_call.1} parent=11 // pred_region
          %s428 = ssub.s32 2048, 2048
          %429 = vsyncadd [#allocation9], %s428
          %s430 = sshll.u32 [#allocation8], 4
          %s431 = int_to_ptr.vmem [resolvable:$true] %s430
          %436 = dma.hbm_to_vmem [thread:$0]  %s5, 2048, %s431, [#allocation9], 128, 128, 8
        $region32: #{tpu_custom_call.1} parent=11 // pred_fallthru
          _
        // Predicated region
        $region33: #{tpu_custom_call.1} parent=11 // pred_check
          %p437 = pneg %p183
        $region34: #{tpu_custom_call.1} parent=11 // pred_check_branch
          %439 = sbr.rel (%p437) target = $region36
        $region35: #{tpu_custom_call.1} parent=11 // pred_region
          _
        $region36: #{tpu_custom_call.1} parent=11 // pred_fallthru
          _
        // Predicated region
        $region37: #{tpu_custom_call.1} parent=11 // pred_check
          %p440 = pneg %p204
        $region38: #{tpu_custom_call.1} parent=11 // pred_check_branch
          %442 = sbr.rel (%p440) target = $region40
        $region39: #{tpu_custom_call.1} parent=11 // pred_region
          %s444 = ssub.s32 2048, 2048
          %445 = vsyncadd [#allocation9], %s444
          %s446 = sshll.u32 [#allocation10], 4
          %s447 = int_to_ptr.vmem [resolvable:$true] %s446
          %452 = dma.hbm_to_vmem [thread:$0]  %s7, 2048, %s447, [#allocation9], 128, 128, 8
        $region40: #{tpu_custom_call.1} parent=11 // pred_fallthru
          _
        // Predicated region
        $region41: #{tpu_custom_call.1} parent=11 // pred_check
          %p453 = pneg %p225
        $region42: #{tpu_custom_call.1} parent=11 // pred_check_branch
          %455 = sbr.rel (%p453) target = $region44
        $region43: #{tpu_custom_call.1} parent=11 // pred_region
          _
        $region44: #{tpu_custom_call.1} parent=11 // pred_fallthru
          _
        // Predicated region
        $region45: #{tpu_custom_call.1} parent=11 // pred_check
          %p456 = pneg %p246
        $region46: #{tpu_custom_call.1} parent=11 // pred_check_branch
          %458 = sbr.rel (%p456) target = $region48
        $region47: #{tpu_custom_call.1} parent=11 // pred_region
          %s460 = ssub.s32 2048, 2048
          %461 = vsyncadd [#allocation12], %s460
          %s462 = sshll.u32 [#allocation11], 4
          %s463 = int_to_ptr.vmem [resolvable:$true] %s462
          %468 = dma.hbm_to_vmem [thread:$0]  %s9, 2048, %s463, [#allocation12], 128, 128, 8
        $region48: #{tpu_custom_call.1} parent=11 // pred_fallthru
          _
        // Predicated region
        $region49: #{tpu_custom_call.1} parent=11 // pred_check
          %p469 = pneg %p267
        $region50: #{tpu_custom_call.1} parent=11 // pred_check_branch
          %471 = sbr.rel (%p469) target = $region52
        $region51: #{tpu_custom_call.1} parent=11 // pred_region
          _
        $region52: #{tpu_custom_call.1} parent=11 // pred_fallthru
          _
        // Predicated region
        $region53: #{tpu_custom_call.1} parent=11 // pred_check
          %p472 = pneg %p288
        $region54: #{tpu_custom_call.1} parent=11 // pred_check_branch
          %474 = sbr.rel (%p472) target = $region56
        $region55: #{tpu_custom_call.1} parent=11 // pred_region
          %s476 = ssub.s32 2048, 2048
          %477 = vsyncadd [#allocation12], %s476
          %s478 = sshll.u32 [#allocation13], 4
          %s479 = int_to_ptr.vmem [resolvable:$true] %s478
          %484 = dma.hbm_to_vmem [thread:$0]  %s11, 2048, %s479, [#allocation12], 128, 128, 8
        $region56: #{tpu_custom_call.1} parent=11 // pred_fallthru
          _
        // Predicated region
        $region57: #{tpu_custom_call.1} parent=11 // pred_check
          %p485 = pneg %p309
        $region58: #{tpu_custom_call.1} parent=11 // pred_check_branch
          %487 = sbr.rel (%p485) target = $region60
        $region59: #{tpu_custom_call.1} parent=11 // pred_region
          _
        $region60: #{tpu_custom_call.1} parent=11 // pred_fallthru
          _
        // Predicated region
        $region61: #{tpu_custom_call.1} parent=11 // pred_check
          %p488 = pneg %p330
        $region62: #{tpu_custom_call.1} parent=11 // pred_check_branch
          %490 = sbr.rel (%p488) target = $region64
        $region63: #{tpu_custom_call.1} parent=11 // pred_region
          %s492 = ssub.s32 2048, 2048
          %493 = vsyncadd [#allocation15], %s492
          %s494 = sshll.u32 [#allocation14], 4
          %s495 = int_to_ptr.vmem [resolvable:$true] %s494
          %500 = dma.hbm_to_vmem [thread:$0]  %s13, 2048, %s495, [#allocation15], 128, 128, 8
        $region64: #{tpu_custom_call.1} parent=11 // pred_fallthru
          _
        // Predicated region
        $region65: #{tpu_custom_call.1} parent=11 // pred_check
          %p501 = pneg %p351
        $region66: #{tpu_custom_call.1} parent=11 // pred_check_branch
          %503 = sbr.rel (%p501) target = $region68
        $region67: #{tpu_custom_call.1} parent=11 // pred_region
          _
        $region68: #{tpu_custom_call.1} parent=11 // pred_fallthru
          _
      $region12: #{tpu_custom_call.1} parent=5 // pred_fallthru
        _
      %p504 = scmp.lt.s32.totalorder %s31, 2
      // Predicated region
      $region69: #{tpu_custom_call.1} parent=5 // pred_check
        %p505 = pneg %p504
      $region70: #{tpu_custom_call.1} parent=5 // pred_check_branch
        %507 = sbr.rel (%p505) target = $region72
      $region71: #{tpu_custom_call.1} parent=5 // pred_region
        // Predicated region
        $region73: #{tpu_custom_call.1} parent=71 // pred_check
          %p508 = pneg %p51
        $region74: #{tpu_custom_call.1} parent=71 // pred_check_branch
          %510 = sbr.rel (%p508) target = $region76
        $region75: #{tpu_custom_call.1} parent=71 // pred_region
          %s511 = sand.u32 %s41, 1
          %s512 = scalar_lea.sflag [#allocation3], %s511
          %s513 = sand.u32 %s41, 1
          %s514 = smul.addr %s513, 256
          %s515 = scalar_lea.vmem [#allocation2], %s514
          %s516 = smul.u32 32, %s31
          %s518 = ssub.s32 4096, 4096
          %519 = vsyncadd %s512, %s518
          %s520 = smul.addr %s516, 128
          %s521 = scalar_lea.hbm %s0, %s520
          %s522 = sshll.u32 %s515, 4
          %s523 = int_to_ptr.vmem [resolvable:$true] %s522
          %528 = dma.hbm_to_vmem [thread:$0]  %s521, 4096, %s523, %s512, 128, 128, 8
        $region76: #{tpu_custom_call.1} parent=71 // pred_fallthru
          _
      $region72: #{tpu_custom_call.1} parent=5 // pred_fallthru
        _
      %p529 = scmp.le.s32.totalorder 1, %s31
      %p530 = scmp.lt.s32.totalorder %s31, 3
      %p531 = pnand %p529, %p530
      %p532 = pneg %p531
      // Predicated region
      $region77: #{tpu_custom_call.1} parent=5 // pred_check
        _
      $region78: #{tpu_custom_call.1} parent=5 // pred_check_branch
        %534 = sbr.rel (%p531) target = $region80
      $region79: #{tpu_custom_call.1} parent=5 // pred_region
        %s535 = ssub.s32 %s31, 1
        %s536 = sand.u32 %s44, 1
        %s537 = scalar_lea.sflag [#allocation3], %s536
        %s538 = sand.u32 %s44, 1
        %s539 = smul.addr %s538, 256
        %s540 = scalar_lea.vmem [#allocation2], %s539
        // Predicated region
        $region81: #{tpu_custom_call.1} parent=79 // pred_check
          %p541 = pneg %p57
        $region82: #{tpu_custom_call.1} parent=79 // pred_check_branch
          %543 = sbr.rel (%p541) target = $region84
        $region83: #{tpu_custom_call.1} parent=79 // pred_region
          %544 = dma.done %s537, 4096
        $region84: #{tpu_custom_call.1} parent=79 // pred_fallthru
          _
        // Predicated region
        $region85: #{tpu_custom_call.1} parent=79 // pred_check
          %p545 = pneg %p78
        $region86: #{tpu_custom_call.1} parent=79 // pred_check_branch
          %547 = sbr.rel (%p545) target = $region88
        $region87: #{tpu_custom_call.1} parent=79 // pred_region
          %548 = dma.done [#allocation6], 2048
        $region88: #{tpu_custom_call.1} parent=79 // pred_fallthru
          _
        // Predicated region
        $region89: #{tpu_custom_call.1} parent=79 // pred_check
          %p549 = pneg %p120
        $region90: #{tpu_custom_call.1} parent=79 // pred_check_branch
          %551 = sbr.rel (%p549) target = $region92
        $region91: #{tpu_custom_call.1} parent=79 // pred_region
          %552 = dma.done [#allocation6], 2048
        $region92: #{tpu_custom_call.1} parent=79 // pred_fallthru
          _
        // Predicated region
        $region93: #{tpu_custom_call.1} parent=79 // pred_check
          %p553 = pneg %p162
        $region94: #{tpu_custom_call.1} parent=79 // pred_check_branch
          %555 = sbr.rel (%p553) target = $region96
        $region95: #{tpu_custom_call.1} parent=79 // pred_region
          %556 = dma.done [#allocation9], 2048
        $region96: #{tpu_custom_call.1} parent=79 // pred_fallthru
          _
        // Predicated region
        $region97: #{tpu_custom_call.1} parent=79 // pred_check
          %p557 = pneg %p204
        $region98: #{tpu_custom_call.1} parent=79 // pred_check_branch
          %559 = sbr.rel (%p557) target = $region100
        $region99: #{tpu_custom_call.1} parent=79 // pred_region
          %560 = dma.done [#allocation9], 2048
        $region100: #{tpu_custom_call.1} parent=79 // pred_fallthru
          _
        // Predicated region
        $region101: #{tpu_custom_call.1} parent=79 // pred_check
          %p561 = pneg %p246
        $region102: #{tpu_custom_call.1} parent=79 // pred_check_branch
          %563 = sbr.rel (%p561) target = $region104
        $region103: #{tpu_custom_call.1} parent=79 // pred_region
          %564 = dma.done [#allocation12], 2048
        $region104: #{tpu_custom_call.1} parent=79 // pred_fallthru
          _
        // Predicated region
        $region105: #{tpu_custom_call.1} parent=79 // pred_check
          %p565 = pneg %p288
        $region106: #{tpu_custom_call.1} parent=79 // pred_check_branch
          %567 = sbr.rel (%p565) target = $region108
        $region107: #{tpu_custom_call.1} parent=79 // pred_region
          %568 = dma.done [#allocation12], 2048
        $region108: #{tpu_custom_call.1} parent=79 // pred_fallthru
          _
        // Predicated region
        $region109: #{tpu_custom_call.1} parent=79 // pred_check
          %p569 = pneg %p330
        $region110: #{tpu_custom_call.1} parent=79 // pred_check_branch
          %571 = sbr.rel (%p569) target = $region112
        $region111: #{tpu_custom_call.1} parent=79 // pred_region
          %572 = dma.done [#allocation15], 2048
        $region112: #{tpu_custom_call.1} parent=79 // pred_fallthru
          _
        %s573 = sand.u32 %s44, 1
        %s574 = scalar_lea.sflag [#allocation3], %s573
        %s575 = sand.u32 %s44, 1
        %s576 = smul.addr %s575, 256
        %s577 = scalar_lea.vmem [#allocation2], %s576
        %p578 = pneg %p57
        %p579 = pneg %p54
        %p580 = pneg %p78
        %p581 = pneg %p75
        %p582 = pneg %p99
        %p583 = pneg %p96
        %p584 = pneg %p120
        %p585 = pneg %p117
        %p586 = pneg %p141
        %p587 = pneg %p138
        %p588 = pneg %p162
        %p589 = pneg %p159
        %p590 = pneg %p183
        %p591 = pneg %p180
        %p592 = pneg %p204
        %p593 = pneg %p201
        %p594 = pneg %p225
        %p595 = pneg %p222
        %p596 = pneg %p246
        %p597 = pneg %p243
        %p598 = pneg %p267
        %p599 = pneg %p264
        %p600 = pneg %p288
        %p601 = pneg %p285
        %p602 = pneg %p309
        %p603 = pneg %p306
        %p604 = pneg %p330
        %p605 = pneg %p327
        %p606 = pneg %p351
        %p607 = pneg %p348
        %p608 = pneg %p377
        %p609 = pneg %p374
        %s610 = sand.u32 %s364, 1
        %s611 = scalar_lea.sflag [#allocation4], %s610
        %s612 = sand.u32 %s364, 1
        %s613 = smul.addr %s612, 256
        %s614 = scalar_lea.vmem [#allocation16], %s613
        %s615 = smul.u32 32, %s36
        %s616 = smul.u32 32, %s36
        %v617 = vld [vmem:[%s540] sm:$0xff]
        %v618 = vld [vmem:[%s540 + $0x8] sm:$0xff]
        %v619 = vld [vmem:[%s540 + $0x10] sm:$0xff]
        %v620 = vld [vmem:[%s540 + $0x18] sm:$0xff]
        %v621 = vld [vmem:[%s540 + $0x20] sm:$0xff]
        %v622 = vld [vmem:[%s540 + $0x28] sm:$0xff]
        %v623 = vld [vmem:[%s540 + $0x30] sm:$0xff]
        %v624 = vld [vmem:[%s540 + $0x38] sm:$0xff]
        %v625 = vld [vmem:[%s540 + $0x40] sm:$0xff]
        %v626 = vld [vmem:[%s540 + $0x48] sm:$0xff]
        %v627 = vld [vmem:[%s540 + $0x50] sm:$0xff]
        %v628 = vld [vmem:[%s540 + $0x58] sm:$0xff]
        %v629 = vld [vmem:[%s540 + $0x60] sm:$0xff]
        %v630 = vld [vmem:[%s540 + $0x68] sm:$0xff]
        %v631 = vld [vmem:[%s540 + $0x70] sm:$0xff]
        %v632 = vld [vmem:[%s540 + $0x78] sm:$0xff]
        %v633 = vld [vmem:[%s540 + $0x80] sm:$0xff]
        %v634 = vld [vmem:[%s540 + $0x88] sm:$0xff]
        %v635 = vld [vmem:[%s540 + $0x90] sm:$0xff]
        %v636 = vld [vmem:[%s540 + $0x98] sm:$0xff]
        %v637 = vld [vmem:[%s540 + $0xa0] sm:$0xff]
        %v638 = vld [vmem:[%s540 + $0xa8] sm:$0xff]
        %v639 = vld [vmem:[%s540 + $0xb0] sm:$0xff]
        %v640 = vld [vmem:[%s540 + $0xb8] sm:$0xff]
        %v641 = vld [vmem:[%s540 + $0xc0] sm:$0xff]
        %v642 = vld [vmem:[%s540 + $0xc8] sm:$0xff]
        %v643 = vld [vmem:[%s540 + $0xd0] sm:$0xff]
        %v644 = vld [vmem:[%s540 + $0xd8] sm:$0xff]
        %v645 = vld [vmem:[%s540 + $0xe0] sm:$0xff]
        %v646 = vld [vmem:[%s540 + $0xe8] sm:$0xff]
        %v647 = vld [vmem:[%s540 + $0xf0] sm:$0xff]
        %v648 = vld [vmem:[%s540 + $0xf8] sm:$0xff]
        %v649 = vld [vmem:[#allocation5] sm:$0xff]
        %v650 = vld [vmem:[#allocation5 + $0x8] sm:$0xff]
        %v651 = vld [vmem:[#allocation5 + $0x10] sm:$0xff]
        %v652 = vld [vmem:[#allocation5 + $0x18] sm:$0xff]
        %v653 = vld [vmem:[#allocation5 + $0x20] sm:$0xff]
        %v654 = vld [vmem:[#allocation5 + $0x28] sm:$0xff]
        %v655 = vld [vmem:[#allocation5 + $0x30] sm:$0xff]
        %v656 = vld [vmem:[#allocation5 + $0x38] sm:$0xff]
        %v657 = vld [vmem:[#allocation5 + $0x40] sm:$0xff]
        %v658 = vld [vmem:[#allocation5 + $0x48] sm:$0xff]
        %v659 = vld [vmem:[#allocation5 + $0x50] sm:$0xff]
        %v660 = vld [vmem:[#allocation5 + $0x58] sm:$0xff]
        %v661 = vld [vmem:[#allocation5 + $0x60] sm:$0xff]
        %v662 = vld [vmem:[#allocation5 + $0x68] sm:$0xff]
        %v663 = vld [vmem:[#allocation5 + $0x70] sm:$0xff]
        %v664 = vld [vmem:[#allocation5 + $0x78] sm:$0xff]
        %v665 = vld [vmem:[%s2] sm:$0x1]
        %v667 = vlaneseq
        %v668 = vshrl.u32 %v667, 7
        %v669 = vsub.s32 0, %v668
        %v670 = vrot.slane %v665, %v669
        %672 = vmatprep.subr.mxu0 0.0
        %673 = vmatpush1.msra.mxu0 %v664
        %674 = vmatprep.subr.mxu0 0.0
        %675 = vmatpush1.msra.mxu0 %v663
        %676 = vmatprep.subr.mxu0 0.0
        %677 = vmatpush1.msra.mxu0 %v662
        %678 = vmatprep.subr.mxu0 0.0
        %679 = vmatpush1.msra.mxu0 %v661
        %680 = vmatprep.subr.mxu0 0.0
        %681 = vmatpush1.msra.mxu0 %v660
        %682 = vmatprep.subr.mxu0 0.0
        %683 = vmatpush1.msra.mxu0 %v659
        %684 = vmatprep.subr.mxu0 0.0
        %685 = vmatpush1.msra.mxu0 %v658
        %686 = vmatprep.subr.mxu0 0.0
        %687 = vmatpush1.msra.mxu0 %v657
        %688 = vmatprep.subr.mxu0 0.0
        %689 = vmatpush1.msra.mxu0 %v656
        %690 = vmatprep.subr.mxu0 0.0
        %691 = vmatpush1.msra.mxu0 %v655
        %692 = vmatprep.subr.mxu0 0.0
        %693 = vmatpush1.msra.mxu0 %v654
        %694 = vmatprep.subr.mxu0 0.0
        %695 = vmatpush1.msra.mxu0 %v653
        %696 = vmatprep.subr.mxu0 0.0
        %697 = vmatpush1.msra.mxu0 %v652
        %698 = vmatprep.subr.mxu0 0.0
        %699 = vmatpush1.msra.mxu0 %v651
        %700 = vmatprep.subr.mxu0 0.0
        %701 = vmatpush1.msra.mxu0 %v650
        %702 = vmatprep.subr.mxu0 0.0
        %703 = vmatpush1.msra.mxu0 %v649
        %704 = vmatprep.subr.mxu0 0.0
        %705 = vmatpush2.msra.mxu0 0.0
        %706 = vmatprep.subr.mxu0 0.0
        %707 = vmatpush2.msra.mxu0 0.0
        %708 = vmatprep.subr.mxu0 0.0
        %709 = vmatpush2.msra.mxu0 0.0
        %710 = vmatprep.subr.mxu0 0.0
        %711 = vmatpush2.msra.mxu0 0.0
        %712 = vmatprep.subr.mxu0 0.0
        %713 = vmatpush2.msra.mxu0 0.0
        %714 = vmatprep.subr.mxu0 0.0
        %715 = vmatpush2.msra.mxu0 0.0
        %716 = vmatprep.subr.mxu0 0.0
        %717 = vmatpush2.msra.mxu0 0.0
        %718 = vmatprep.subr.mxu0 0.0
        %719 = vmatpush2.msra.mxu0 0.0
        %720 = vmatprep.subr.mxu0 0.0
        %721 = vmatpush2.msra.mxu0 0.0
        %722 = vmatprep.subr.mxu0 0.0
        %723 = vmatpush2.msra.mxu0 0.0
        %724 = vmatprep.subr.mxu0 0.0
        %725 = vmatpush2.msra.mxu0 0.0
        %726 = vmatprep.subr.mxu0 0.0
        %727 = vmatpush2.msra.mxu0 0.0
        %728 = vmatprep.subr.mxu0 0.0
        %729 = vmatpush2.msra.mxu0 0.0
        %730 = vmatprep.subr.mxu0 0.0
        %731 = vmatpush2.msra.mxu0 0.0
        %732 = vmatprep.subr.mxu0 0.0
        %733 = vmatpush2.msra.mxu0 0.0
        %734 = vmatprep.subr.mxu0 0.0
        %735 = vmatpush2.msra.mxu0 0.0
        %736 = vmatprep.mubr.f32.mxu0 0.0
        %737 = vmatmul.mubr.f32.gmra.mxu0 %v617
        %v738 = vpop.f32.mrf.mxu0
        %v739 = vadd.f32 %v670, %v738
        %v740 = vpop.f32.mrf.mxu0
        %741 = vmatprep.mubr.f32.mxu0 0.0
        %742 = vmatmul.mubr.f32.gmra.mxu0 %v618
        %v743 = vpop.f32.mrf.mxu0
        %v744 = vadd.f32 %v670, %v743
        %v745 = vpop.f32.mrf.mxu0
        %746 = vmatprep.mubr.f32.mxu0 0.0
        %747 = vmatmul.mubr.f32.gmra.mxu0 %v619
        %v748 = vpop.f32.mrf.mxu0
        %v749 = vadd.f32 %v670, %v748
        %v750 = vpop.f32.mrf.mxu0
        %751 = vmatprep.mubr.f32.mxu0 0.0
        %752 = vmatmul.mubr.f32.gmra.mxu0 %v620
        %v753 = vpop.f32.mrf.mxu0
        %v754 = vadd.f32 %v670, %v753
        %v755 = vpop.f32.mrf.mxu0
        %756 = vmatprep.mubr.f32.mxu0 0.0
        %757 = vmatmul.mubr.f32.gmra.mxu0 %v621
        %v758 = vpop.f32.mrf.mxu0
        %v759 = vadd.f32 %v670, %v758
        %v760 = vpop.f32.mrf.mxu0
        %761 = vmatprep.mubr.f32.mxu0 0.0
        %762 = vmatmul.mubr.f32.gmra.mxu0 %v622
        %v763 = vpop.f32.mrf.mxu0
        %v764 = vadd.f32 %v670, %v763
        %v765 = vpop.f32.mrf.mxu0
        %766 = vmatprep.mubr.f32.mxu0 0.0
        %767 = vmatmul.mubr.f32.gmra.mxu0 %v623
        %v768 = vpop.f32.mrf.mxu0
        %v769 = vadd.f32 %v670, %v768
        %v770 = vpop.f32.mrf.mxu0
        %771 = vmatprep.mubr.f32.mxu0 0.0
        %772 = vmatmul.mubr.f32.gmra.mxu0 %v624
        %v773 = vpop.f32.mrf.mxu0
        %v774 = vadd.f32 %v670, %v773
        %v775 = vpop.f32.mrf.mxu0
        %776 = vmatprep.mubr.f32.mxu0 0.0
        %777 = vmatmul.mubr.f32.gmra.mxu0 %v625
        %v778 = vpop.f32.mrf.mxu0
        %v779 = vadd.f32 %v670, %v778
        %v780 = vpop.f32.mrf.mxu0
        %781 = vmatprep.mubr.f32.mxu0 0.0
        %782 = vmatmul.mubr.f32.gmra.mxu0 %v626
        %v783 = vpop.f32.mrf.mxu0
        %v784 = vadd.f32 %v670, %v783
        %v785 = vpop.f32.mrf.mxu0
        %786 = vmatprep.mubr.f32.mxu0 0.0
        %787 = vmatmul.mubr.f32.gmra.mxu0 %v627
        %v788 = vpop.f32.mrf.mxu0
        %v789 = vadd.f32 %v670, %v788
        %v790 = vpop.f32.mrf.mxu0
        %791 = vmatprep.mubr.f32.mxu0 0.0
        %792 = vmatmul.mubr.f32.gmra.mxu0 %v628
        %v793 = vpop.f32.mrf.mxu0
        %v794 = vadd.f32 %v670, %v793
        %v795 = vpop.f32.mrf.mxu0
        %796 = vmatprep.mubr.f32.mxu0 0.0
        %797 = vmatmul.mubr.f32.gmra.mxu0 %v629
        %v798 = vpop.f32.mrf.mxu0
        %v799 = vadd.f32 %v670, %v798
        %v800 = vpop.f32.mrf.mxu0
        %801 = vmatprep.mubr.f32.mxu0 0.0
        %802 = vmatmul.mubr.f32.gmra.mxu0 %v630
        %v803 = vpop.f32.mrf.mxu0
        %v804 = vadd.f32 %v670, %v803
        %v805 = vpop.f32.mrf.mxu0
        %806 = vmatprep.mubr.f32.mxu0 0.0
        %807 = vmatmul.mubr.f32.gmra.mxu0 %v631
        %v808 = vpop.f32.mrf.mxu0
        %v809 = vadd.f32 %v670, %v808
        %v810 = vpop.f32.mrf.mxu0
        %811 = vmatprep.mubr.f32.mxu0 0.0
        %812 = vmatmul.mubr.f32.gmra.mxu0 %v632
        %v813 = vpop.f32.mrf.mxu0
        %v814 = vadd.f32 %v670, %v813
        %v815 = vpop.f32.mrf.mxu0
        %816 = vmatprep.mubr.f32.mxu0 0.0
        %817 = vmatmul.mubr.f32.gmra.mxu0 %v633
        %v818 = vpop.f32.mrf.mxu0
        %v819 = vadd.f32 %v670, %v818
        %v820 = vpop.f32.mrf.mxu0
        %821 = vmatprep.mubr.f32.mxu0 0.0
        %822 = vmatmul.mubr.f32.gmra.mxu0 %v634
        %v823 = vpop.f32.mrf.mxu0
        %v824 = vadd.f32 %v670, %v823
        %v825 = vpop.f32.mrf.mxu0
        %826 = vmatprep.mubr.f32.mxu0 0.0
        %827 = vmatmul.mubr.f32.gmra.mxu0 %v635
        %v828 = vpop.f32.mrf.mxu0
        %v829 = vadd.f32 %v670, %v828
        %v830 = vpop.f32.mrf.mxu0
        %831 = vmatprep.mubr.f32.mxu0 0.0
        %832 = vmatmul.mubr.f32.gmra.mxu0 %v636
        %v833 = vpop.f32.mrf.mxu0
        %v834 = vadd.f32 %v670, %v833
        %v835 = vpop.f32.mrf.mxu0
        %836 = vmatprep.mubr.f32.mxu0 0.0
        %837 = vmatmul.mubr.f32.gmra.mxu0 %v637
        %v838 = vpop.f32.mrf.mxu0
        %v839 = vadd.f32 %v670, %v838
        %v840 = vpop.f32.mrf.mxu0
        %841 = vmatprep.mubr.f32.mxu0 0.0
        %842 = vmatmul.mubr.f32.gmra.mxu0 %v638
        %v843 = vpop.f32.mrf.mxu0
        %v844 = vadd.f32 %v670, %v843
        %v845 = vpop.f32.mrf.mxu0
        %846 = vmatprep.mubr.f32.mxu0 0.0
        %847 = vmatmul.mubr.f32.gmra.mxu0 %v639
        %v848 = vpop.f32.mrf.mxu0
        %v849 = vadd.f32 %v670, %v848
        %v850 = vpop.f32.mrf.mxu0
        %851 = vmatprep.mubr.f32.mxu0 0.0
        %852 = vmatmul.mubr.f32.gmra.mxu0 %v640
        %v853 = vpop.f32.mrf.mxu0
        %v854 = vadd.f32 %v670, %v853
        %v855 = vpop.f32.mrf.mxu0
        %856 = vmatprep.mubr.f32.mxu0 0.0
        %857 = vmatmul.mubr.f32.gmra.mxu0 %v641
        %v858 = vpop.f32.mrf.mxu0
        %v859 = vadd.f32 %v670, %v858
        %v860 = vpop.f32.mrf.mxu0
        %861 = vmatprep.mubr.f32.mxu0 0.0
        %862 = vmatmul.mubr.f32.gmra.mxu0 %v642
        %v863 = vpop.f32.mrf.mxu0
        %v864 = vadd.f32 %v670, %v863
        %v865 = vpop.f32.mrf.mxu0
        %866 = vmatprep.mubr.f32.mxu0 0.0
        %867 = vmatmul.mubr.f32.gmra.mxu0 %v643
        %v868 = vpop.f32.mrf.mxu0
        %v869 = vadd.f32 %v670, %v868
        %v870 = vpop.f32.mrf.mxu0
        %871 = vmatprep.mubr.f32.mxu0 0.0
        %872 = vmatmul.mubr.f32.gmra.mxu0 %v644
        %v873 = vpop.f32.mrf.mxu0
        %v874 = vadd.f32 %v670, %v873
        %v875 = vpop.f32.mrf.mxu0
        %876 = vmatprep.mubr.f32.mxu0 0.0
        %877 = vmatmul.mubr.f32.gmra.mxu0 %v645
        %v878 = vpop.f32.mrf.mxu0
        %v879 = vadd.f32 %v670, %v878
        %v880 = vpop.f32.mrf.mxu0
        %881 = vmatprep.mubr.f32.mxu0 0.0
        %882 = vmatmul.mubr.f32.gmra.mxu0 %v646
        %v883 = vpop.f32.mrf.mxu0
        %v884 = vadd.f32 %v670, %v883
        %v885 = vpop.f32.mrf.mxu0
        %886 = vmatprep.mubr.f32.mxu0 0.0
        %887 = vmatmul.mubr.f32.gmra.mxu0 %v647
        %v888 = vpop.f32.mrf.mxu0
        %v889 = vadd.f32 %v670, %v888
        %v890 = vpop.f32.mrf.mxu0
        %891 = vmatprep.mubr.f32.mxu0 0.0
        %892 = vmatmul.mubr.f32.gmra.mxu0 %v648
        %v893 = vpop.f32.mrf.mxu0
        %v894 = vadd.f32 %v670, %v893
        %v895 = vpop.f32.mrf.mxu0
        %896 = vdwg.mxu0
        %v897 = vmax.f32 %v739, 0.0
        %v898 = vmax.f32 %v744, 0.0
        %v899 = vmax.f32 %v749, 0.0
        %v900 = vmax.f32 %v754, 0.0
        %v901 = vmax.f32 %v759, 0.0
        %v902 = vmax.f32 %v764, 0.0
        %v903 = vmax.f32 %v769, 0.0
        %v904 = vmax.f32 %v774, 0.0
        %v905 = vmax.f32 %v779, 0.0
        %v906 = vmax.f32 %v784, 0.0
        %v907 = vmax.f32 %v789, 0.0
        %v908 = vmax.f32 %v794, 0.0
        %v909 = vmax.f32 %v799, 0.0
        %v910 = vmax.f32 %v804, 0.0
        %v911 = vmax.f32 %v809, 0.0
        %v912 = vmax.f32 %v814, 0.0
        %v913 = vmax.f32 %v819, 0.0
        %v914 = vmax.f32 %v824, 0.0
        %v915 = vmax.f32 %v829, 0.0
        %v916 = vmax.f32 %v834, 0.0
        %v917 = vmax.f32 %v839, 0.0
        %v918 = vmax.f32 %v844, 0.0
        %v919 = vmax.f32 %v849, 0.0
        %v920 = vmax.f32 %v854, 0.0
        %v921 = vmax.f32 %v859, 0.0
        %v922 = vmax.f32 %v864, 0.0
        %v923 = vmax.f32 %v869, 0.0
        %v924 = vmax.f32 %v874, 0.0
        %v925 = vmax.f32 %v879, 0.0
        %v926 = vmax.f32 %v884, 0.0
        %v927 = vmax.f32 %v889, 0.0
        %v928 = vmax.f32 %v894, 0.0
        %v929 = vld [vmem:[#allocation7] sm:$0xff]
        %v930 = vld [vmem:[#allocation7 + $0x8] sm:$0xff]
        %v931 = vld [vmem:[#allocation7 + $0x10] sm:$0xff]
        %v932 = vld [vmem:[#allocation7 + $0x18] sm:$0xff]
        %v933 = vld [vmem:[#allocation7 + $0x20] sm:$0xff]
        %v934 = vld [vmem:[#allocation7 + $0x28] sm:$0xff]
        %v935 = vld [vmem:[#allocation7 + $0x30] sm:$0xff]
        %v936 = vld [vmem:[#allocation7 + $0x38] sm:$0xff]
        %v937 = vld [vmem:[#allocation7 + $0x40] sm:$0xff]
        %v938 = vld [vmem:[#allocation7 + $0x48] sm:$0xff]
        %v939 = vld [vmem:[#allocation7 + $0x50] sm:$0xff]
        %v940 = vld [vmem:[#allocation7 + $0x58] sm:$0xff]
        %v941 = vld [vmem:[#allocation7 + $0x60] sm:$0xff]
        %v942 = vld [vmem:[#allocation7 + $0x68] sm:$0xff]
        %v943 = vld [vmem:[#allocation7 + $0x70] sm:$0xff]
        %v944 = vld [vmem:[#allocation7 + $0x78] sm:$0xff]
        %v945 = vld [vmem:[%s4] sm:$0x1]
        %v947 = vlaneseq
        %v948 = vshrl.u32 %v947, 7
        %v949 = vsub.s32 0, %v948
        %v950 = vrot.slane %v945, %v949
        %952 = vmatprep.subr.mxu0 0.0
        %953 = vmatpush1.msra.mxu0 %v944
        %954 = vmatprep.subr.mxu0 0.0
        %955 = vmatpush1.msra.mxu0 %v943
        %956 = vmatprep.subr.mxu0 0.0
        %957 = vmatpush1.msra.mxu0 %v942
        %958 = vmatprep.subr.mxu0 0.0
        %959 = vmatpush1.msra.mxu0 %v941
        %960 = vmatprep.subr.mxu0 0.0
        %961 = vmatpush1.msra.mxu0 %v940
        %962 = vmatprep.subr.mxu0 0.0
        %963 = vmatpush1.msra.mxu0 %v939
        %964 = vmatprep.subr.mxu0 0.0
        %965 = vmatpush1.msra.mxu0 %v938
        %966 = vmatprep.subr.mxu0 0.0
        %967 = vmatpush1.msra.mxu0 %v937
        %968 = vmatprep.subr.mxu0 0.0
        %969 = vmatpush1.msra.mxu0 %v936
        %970 = vmatprep.subr.mxu0 0.0
        %971 = vmatpush1.msra.mxu0 %v935
        %972 = vmatprep.subr.mxu0 0.0
        %973 = vmatpush1.msra.mxu0 %v934
        %974 = vmatprep.subr.mxu0 0.0
        %975 = vmatpush1.msra.mxu0 %v933
        %976 = vmatprep.subr.mxu0 0.0
        %977 = vmatpush1.msra.mxu0 %v932
        %978 = vmatprep.subr.mxu0 0.0
        %979 = vmatpush1.msra.mxu0 %v931
        %980 = vmatprep.subr.mxu0 0.0
        %981 = vmatpush1.msra.mxu0 %v930
        %982 = vmatprep.subr.mxu0 0.0
        %983 = vmatpush1.msra.mxu0 %v929
        %984 = vmatprep.subr.mxu0 0.0
        %985 = vmatpush2.msra.mxu0 0.0
        %986 = vmatprep.subr.mxu0 0.0
        %987 = vmatpush2.msra.mxu0 0.0
        %988 = vmatprep.subr.mxu0 0.0
        %989 = vmatpush2.msra.mxu0 0.0
        %990 = vmatprep.subr.mxu0 0.0
        %991 = vmatpush2.msra.mxu0 0.0
        %992 = vmatprep.subr.mxu0 0.0
        %993 = vmatpush2.msra.mxu0 0.0
        %994 = vmatprep.subr.mxu0 0.0
        %995 = vmatpush2.msra.mxu0 0.0
        %996 = vmatprep.subr.mxu0 0.0
        %997 = vmatpush2.msra.mxu0 0.0
        %998 = vmatprep.subr.mxu0 0.0
        %999 = vmatpush2.msra.mxu0 0.0
        %1000 = vmatprep.subr.mxu0 0.0
        %1001 = vmatpush2.msra.mxu0 0.0
        %1002 = vmatprep.subr.mxu0 0.0
        %1003 = vmatpush2.msra.mxu0 0.0
        %1004 = vmatprep.subr.mxu0 0.0
        %1005 = vmatpush2.msra.mxu0 0.0
        %1006 = vmatprep.subr.mxu0 0.0
        %1007 = vmatpush2.msra.mxu0 0.0
        %1008 = vmatprep.subr.mxu0 0.0
        %1009 = vmatpush2.msra.mxu0 0.0
        %1010 = vmatprep.subr.mxu0 0.0
        %1011 = vmatpush2.msra.mxu0 0.0
        %1012 = vmatprep.subr.mxu0 0.0
        %1013 = vmatpush2.msra.mxu0 0.0
        %1014 = vmatprep.subr.mxu0 0.0
        %1015 = vmatpush2.msra.mxu0 0.0
        %1016 = vmatprep.mubr.f32.mxu0 0.0
        %1017 = vmatmul.mubr.f32.gmra.mxu0 %v897
        %v1018 = vpop.f32.mrf.mxu0
        %v1019 = vadd.f32 %v950, %v1018
        %v1020 = vpop.f32.mrf.mxu0
        %1021 = vmatprep.mubr.f32.mxu0 0.0
        %1022 = vmatmul.mubr.f32.gmra.mxu0 %v898
        %v1023 = vpop.f32.mrf.mxu0
        %v1024 = vadd.f32 %v950, %v1023
        %v1025 = vpop.f32.mrf.mxu0
        %1026 = vmatprep.mubr.f32.mxu0 0.0
        %1027 = vmatmul.mubr.f32.gmra.mxu0 %v899
        %v1028 = vpop.f32.mrf.mxu0
        %v1029 = vadd.f32 %v950, %v1028
        %v1030 = vpop.f32.mrf.mxu0
        %1031 = vmatprep.mubr.f32.mxu0 0.0
        %1032 = vmatmul.mubr.f32.gmra.mxu0 %v900
        %v1033 = vpop.f32.mrf.mxu0
        %v1034 = vadd.f32 %v950, %v1033
        %v1035 = vpop.f32.mrf.mxu0
        %1036 = vmatprep.mubr.f32.mxu0 0.0
        %1037 = vmatmul.mubr.f32.gmra.mxu0 %v901
        %v1038 = vpop.f32.mrf.mxu0
        %v1039 = vadd.f32 %v950, %v1038
        %v1040 = vpop.f32.mrf.mxu0
        %1041 = vmatprep.mubr.f32.mxu0 0.0
        %1042 = vmatmul.mubr.f32.gmra.mxu0 %v902
        %v1043 = vpop.f32.mrf.mxu0
        %v1044 = vadd.f32 %v950, %v1043
        %v1045 = vpop.f32.mrf.mxu0
        %1046 = vmatprep.mubr.f32.mxu0 0.0
        %1047 = vmatmul.mubr.f32.gmra.mxu0 %v903
        %v1048 = vpop.f32.mrf.mxu0
        %v1049 = vadd.f32 %v950, %v1048
        %v1050 = vpop.f32.mrf.mxu0
        %1051 = vmatprep.mubr.f32.mxu0 0.0
        %1052 = vmatmul.mubr.f32.gmra.mxu0 %v904
        %v1053 = vpop.f32.mrf.mxu0
        %v1054 = vadd.f32 %v950, %v1053
        %v1055 = vpop.f32.mrf.mxu0
        %1056 = vmatprep.mubr.f32.mxu0 0.0
        %1057 = vmatmul.mubr.f32.gmra.mxu0 %v905
        %v1058 = vpop.f32.mrf.mxu0
        %v1059 = vadd.f32 %v950, %v1058
        %v1060 = vpop.f32.mrf.mxu0
        %1061 = vmatprep.mubr.f32.mxu0 0.0
        %1062 = vmatmul.mubr.f32.gmra.mxu0 %v906
        %v1063 = vpop.f32.mrf.mxu0
        %v1064 = vadd.f32 %v950, %v1063
        %v1065 = vpop.f32.mrf.mxu0
        %1066 = vmatprep.mubr.f32.mxu0 0.0
        %1067 = vmatmul.mubr.f32.gmra.mxu0 %v907
        %v1068 = vpop.f32.mrf.mxu0
        %v1069 = vadd.f32 %v950, %v1068
        %v1070 = vpop.f32.mrf.mxu0
        %1071 = vmatprep.mubr.f32.mxu0 0.0
        %1072 = vmatmul.mubr.f32.gmra.mxu0 %v908
        %v1073 = vpop.f32.mrf.mxu0
        %v1074 = vadd.f32 %v950, %v1073
        %v1075 = vpop.f32.mrf.mxu0
        %1076 = vmatprep.mubr.f32.mxu0 0.0
        %1077 = vmatmul.mubr.f32.gmra.mxu0 %v909
        %v1078 = vpop.f32.mrf.mxu0
        %v1079 = vadd.f32 %v950, %v1078
        %v1080 = vpop.f32.mrf.mxu0
        %1081 = vmatprep.mubr.f32.mxu0 0.0
        %1082 = vmatmul.mubr.f32.gmra.mxu0 %v910
        %v1083 = vpop.f32.mrf.mxu0
        %v1084 = vadd.f32 %v950, %v1083
        %v1085 = vpop.f32.mrf.mxu0
        %1086 = vmatprep.mubr.f32.mxu0 0.0
        %1087 = vmatmul.mubr.f32.gmra.mxu0 %v911
        %v1088 = vpop.f32.mrf.mxu0
        %v1089 = vadd.f32 %v950, %v1088
        %v1090 = vpop.f32.mrf.mxu0
        %1091 = vmatprep.mubr.f32.mxu0 0.0
        %1092 = vmatmul.mubr.f32.gmra.mxu0 %v912
        %v1093 = vpop.f32.mrf.mxu0
        %v1094 = vadd.f32 %v950, %v1093
        %v1095 = vpop.f32.mrf.mxu0
        %1096 = vmatprep.mubr.f32.mxu0 0.0
        %1097 = vmatmul.mubr.f32.gmra.mxu0 %v913
        %v1098 = vpop.f32.mrf.mxu0
        %v1099 = vadd.f32 %v950, %v1098
        %v1100 = vpop.f32.mrf.mxu0
        %1101 = vmatprep.mubr.f32.mxu0 0.0
        %1102 = vmatmul.mubr.f32.gmra.mxu0 %v914
        %v1103 = vpop.f32.mrf.mxu0
        %v1104 = vadd.f32 %v950, %v1103
        %v1105 = vpop.f32.mrf.mxu0
        %1106 = vmatprep.mubr.f32.mxu0 0.0
        %1107 = vmatmul.mubr.f32.gmra.mxu0 %v915
        %v1108 = vpop.f32.mrf.mxu0
        %v1109 = vadd.f32 %v950, %v1108
        %v1110 = vpop.f32.mrf.mxu0
        %1111 = vmatprep.mubr.f32.mxu0 0.0
        %1112 = vmatmul.mubr.f32.gmra.mxu0 %v916
        %v1113 = vpop.f32.mrf.mxu0
        %v1114 = vadd.f32 %v950, %v1113
        %v1115 = vpop.f32.mrf.mxu0
        %1116 = vmatprep.mubr.f32.mxu0 0.0
        %1117 = vmatmul.mubr.f32.gmra.mxu0 %v917
        %v1118 = vpop.f32.mrf.mxu0
        %v1119 = vadd.f32 %v950, %v1118
        %v1120 = vpop.f32.mrf.mxu0
        %1121 = vmatprep.mubr.f32.mxu0 0.0
        %1122 = vmatmul.mubr.f32.gmra.mxu0 %v918
        %v1123 = vpop.f32.mrf.mxu0
        %v1124 = vadd.f32 %v950, %v1123
        %v1125 = vpop.f32.mrf.mxu0
        %1126 = vmatprep.mubr.f32.mxu0 0.0
        %1127 = vmatmul.mubr.f32.gmra.mxu0 %v919
        %v1128 = vpop.f32.mrf.mxu0
        %v1129 = vadd.f32 %v950, %v1128
        %v1130 = vpop.f32.mrf.mxu0
        %1131 = vmatprep.mubr.f32.mxu0 0.0
        %1132 = vmatmul.mubr.f32.gmra.mxu0 %v920
        %v1133 = vpop.f32.mrf.mxu0
        %v1134 = vadd.f32 %v950, %v1133
        %v1135 = vpop.f32.mrf.mxu0
        %1136 = vmatprep.mubr.f32.mxu0 0.0
        %1137 = vmatmul.mubr.f32.gmra.mxu0 %v921
        %v1138 = vpop.f32.mrf.mxu0
        %v1139 = vadd.f32 %v950, %v1138
        %v1140 = vpop.f32.mrf.mxu0
        %1141 = vmatprep.mubr.f32.mxu0 0.0
        %1142 = vmatmul.mubr.f32.gmra.mxu0 %v922
        %v1143 = vpop.f32.mrf.mxu0
        %v1144 = vadd.f32 %v950, %v1143
        %v1145 = vpop.f32.mrf.mxu0
        %1146 = vmatprep.mubr.f32.mxu0 0.0
        %1147 = vmatmul.mubr.f32.gmra.mxu0 %v923
        %v1148 = vpop.f32.mrf.mxu0
        %v1149 = vadd.f32 %v950, %v1148
        %v1150 = vpop.f32.mrf.mxu0
        %1151 = vmatprep.mubr.f32.mxu0 0.0
        %1152 = vmatmul.mubr.f32.gmra.mxu0 %v924
        %v1153 = vpop.f32.mrf.mxu0
        %v1154 = vadd.f32 %v950, %v1153
        %v1155 = vpop.f32.mrf.mxu0
        %1156 = vmatprep.mubr.f32.mxu0 0.0
        %1157 = vmatmul.mubr.f32.gmra.mxu0 %v925
        %v1158 = vpop.f32.mrf.mxu0
        %v1159 = vadd.f32 %v950, %v1158
        %v1160 = vpop.f32.mrf.mxu0
        %1161 = vmatprep.mubr.f32.mxu0 0.0
        %1162 = vmatmul.mubr.f32.gmra.mxu0 %v926
        %v1163 = vpop.f32.mrf.mxu0
        %v1164 = vadd.f32 %v950, %v1163
        %v1165 = vpop.f32.mrf.mxu0
        %1166 = vmatprep.mubr.f32.mxu0 0.0
        %1167 = vmatmul.mubr.f32.gmra.mxu0 %v927
        %v1168 = vpop.f32.mrf.mxu0
        %v1169 = vadd.f32 %v950, %v1168
        %v1170 = vpop.f32.mrf.mxu0
        %1171 = vmatprep.mubr.f32.mxu0 0.0
        %1172 = vmatmul.mubr.f32.gmra.mxu0 %v928
        %v1173 = vpop.f32.mrf.mxu0
        %v1174 = vadd.f32 %v950, %v1173
        %v1175 = vpop.f32.mrf.mxu0
        %1176 = vdwg.mxu0
        %v1177 = vmax.f32 %v1019, 0.0
        %v1178 = vmax.f32 %v1024, 0.0
        %v1179 = vmax.f32 %v1029, 0.0
        %v1180 = vmax.f32 %v1034, 0.0
        %v1181 = vmax.f32 %v1039, 0.0
        %v1182 = vmax.f32 %v1044, 0.0
        %v1183 = vmax.f32 %v1049, 0.0
        %v1184 = vmax.f32 %v1054, 0.0
        %v1185 = vmax.f32 %v1059, 0.0
        %v1186 = vmax.f32 %v1064, 0.0
        %v1187 = vmax.f32 %v1069, 0.0
        %v1188 = vmax.f32 %v1074, 0.0
        %v1189 = vmax.f32 %v1079, 0.0
        %v1190 = vmax.f32 %v1084, 0.0
        %v1191 = vmax.f32 %v1089, 0.0
        %v1192 = vmax.f32 %v1094, 0.0
        %v1193 = vmax.f32 %v1099, 0.0
        %v1194 = vmax.f32 %v1104, 0.0
        %v1195 = vmax.f32 %v1109, 0.0
        %v1196 = vmax.f32 %v1114, 0.0
        %v1197 = vmax.f32 %v1119, 0.0
        %v1198 = vmax.f32 %v1124, 0.0
        %v1199 = vmax.f32 %v1129, 0.0
        %v1200 = vmax.f32 %v1134, 0.0
        %v1201 = vmax.f32 %v1139, 0.0
        %v1202 = vmax.f32 %v1144, 0.0
        %v1203 = vmax.f32 %v1149, 0.0
        %v1204 = vmax.f32 %v1154, 0.0
        %v1205 = vmax.f32 %v1159, 0.0
        %v1206 = vmax.f32 %v1164, 0.0
        %v1207 = vmax.f32 %v1169, 0.0
        %v1208 = vmax.f32 %v1174, 0.0
        %v1209 = vld [vmem:[#allocation8] sm:$0xff]
        %v1210 = vld [vmem:[#allocation8 + $0x8] sm:$0xff]
        %v1211 = vld [vmem:[#allocation8 + $0x10] sm:$0xff]
        %v1212 = vld [vmem:[#allocation8 + $0x18] sm:$0xff]
        %v1213 = vld [vmem:[#allocation8 + $0x20] sm:$0xff]
        %v1214 = vld [vmem:[#allocation8 + $0x28] sm:$0xff]
        %v1215 = vld [vmem:[#allocation8 + $0x30] sm:$0xff]
        %v1216 = vld [vmem:[#allocation8 + $0x38] sm:$0xff]
        %v1217 = vld [vmem:[#allocation8 + $0x40] sm:$0xff]
        %v1218 = vld [vmem:[#allocation8 + $0x48] sm:$0xff]
        %v1219 = vld [vmem:[#allocation8 + $0x50] sm:$0xff]
        %v1220 = vld [vmem:[#allocation8 + $0x58] sm:$0xff]
        %v1221 = vld [vmem:[#allocation8 + $0x60] sm:$0xff]
        %v1222 = vld [vmem:[#allocation8 + $0x68] sm:$0xff]
        %v1223 = vld [vmem:[#allocation8 + $0x70] sm:$0xff]
        %v1224 = vld [vmem:[#allocation8 + $0x78] sm:$0xff]
        %v1225 = vld [vmem:[%s6] sm:$0x1]
        %v1227 = vlaneseq
        %v1228 = vshrl.u32 %v1227, 7
        %v1229 = vsub.s32 0, %v1228
        %v1230 = vrot.slane %v1225, %v1229
        %1232 = vmatprep.subr.mxu0 0.0
        %1233 = vmatpush1.msra.mxu0 %v1224
        %1234 = vmatprep.subr.mxu0 0.0
        %1235 = vmatpush1.msra.mxu0 %v1223
        %1236 = vmatprep.subr.mxu0 0.0
        %1237 = vmatpush1.msra.mxu0 %v1222
        %1238 = vmatprep.subr.mxu0 0.0
        %1239 = vmatpush1.msra.mxu0 %v1221
        %1240 = vmatprep.subr.mxu0 0.0
        %1241 = vmatpush1.msra.mxu0 %v1220
        %1242 = vmatprep.subr.mxu0 0.0
        %1243 = vmatpush1.msra.mxu0 %v1219
        %1244 = vmatprep.subr.mxu0 0.0
        %1245 = vmatpush1.msra.mxu0 %v1218
        %1246 = vmatprep.subr.mxu0 0.0
        %1247 = vmatpush1.msra.mxu0 %v1217
        %1248 = vmatprep.subr.mxu0 0.0
        %1249 = vmatpush1.msra.mxu0 %v1216
        %1250 = vmatprep.subr.mxu0 0.0
        %1251 = vmatpush1.msra.mxu0 %v1215
        %1252 = vmatprep.subr.mxu0 0.0
        %1253 = vmatpush1.msra.mxu0 %v1214
        %1254 = vmatprep.subr.mxu0 0.0
        %1255 = vmatpush1.msra.mxu0 %v1213
        %1256 = vmatprep.subr.mxu0 0.0
        %1257 = vmatpush1.msra.mxu0 %v1212
        %1258 = vmatprep.subr.mxu0 0.0
        %1259 = vmatpush1.msra.mxu0 %v1211
        %1260 = vmatprep.subr.mxu0 0.0
        %1261 = vmatpush1.msra.mxu0 %v1210
        %1262 = vmatprep.subr.mxu0 0.0
        %1263 = vmatpush1.msra.mxu0 %v1209
        %1264 = vmatprep.subr.mxu0 0.0
        %1265 = vmatpush2.msra.mxu0 0.0
        %1266 = vmatprep.subr.mxu0 0.0
        %1267 = vmatpush2.msra.mxu0 0.0
        %1268 = vmatprep.subr.mxu0 0.0
        %1269 = vmatpush2.msra.mxu0 0.0
        %1270 = vmatprep.subr.mxu0 0.0
        %1271 = vmatpush2.msra.mxu0 0.0
        %1272 = vmatprep.subr.mxu0 0.0
        %1273 = vmatpush2.msra.mxu0 0.0
        %1274 = vmatprep.subr.mxu0 0.0
        %1275 = vmatpush2.msra.mxu0 0.0
        %1276 = vmatprep.subr.mxu0 0.0
        %1277 = vmatpush2.msra.mxu0 0.0
        %1278 = vmatprep.subr.mxu0 0.0
        %1279 = vmatpush2.msra.mxu0 0.0
        %1280 = vmatprep.subr.mxu0 0.0
        %1281 = vmatpush2.msra.mxu0 0.0
        %1282 = vmatprep.subr.mxu0 0.0
        %1283 = vmatpush2.msra.mxu0 0.0
        %1284 = vmatprep.subr.mxu0 0.0
        %1285 = vmatpush2.msra.mxu0 0.0
        %1286 = vmatprep.subr.mxu0 0.0
        %1287 = vmatpush2.msra.mxu0 0.0
        %1288 = vmatprep.subr.mxu0 0.0
        %1289 = vmatpush2.msra.mxu0 0.0
        %1290 = vmatprep.subr.mxu0 0.0
        %1291 = vmatpush2.msra.mxu0 0.0
        %1292 = vmatprep.subr.mxu0 0.0
        %1293 = vmatpush2.msra.mxu0 0.0
        %1294 = vmatprep.subr.mxu0 0.0
        %1295 = vmatpush2.msra.mxu0 0.0
        %1296 = vmatprep.mubr.f32.mxu0 0.0
        %1297 = vmatmul.mubr.f32.gmra.mxu0 %v1177
        %v1298 = vpop.f32.mrf.mxu0
        %v1299 = vadd.f32 %v1230, %v1298
        %v1300 = vpop.f32.mrf.mxu0
        %1301 = vmatprep.mubr.f32.mxu0 0.0
        %1302 = vmatmul.mubr.f32.gmra.mxu0 %v1178
        %v1303 = vpop.f32.mrf.mxu0
        %v1304 = vadd.f32 %v1230, %v1303
        %v1305 = vpop.f32.mrf.mxu0
        %1306 = vmatprep.mubr.f32.mxu0 0.0
        %1307 = vmatmul.mubr.f32.gmra.mxu0 %v1179
        %v1308 = vpop.f32.mrf.mxu0
        %v1309 = vadd.f32 %v1230, %v1308
        %v1310 = vpop.f32.mrf.mxu0
        %1311 = vmatprep.mubr.f32.mxu0 0.0
        %1312 = vmatmul.mubr.f32.gmra.mxu0 %v1180
        %v1313 = vpop.f32.mrf.mxu0
        %v1314 = vadd.f32 %v1230, %v1313
        %v1315 = vpop.f32.mrf.mxu0
        %1316 = vmatprep.mubr.f32.mxu0 0.0
        %1317 = vmatmul.mubr.f32.gmra.mxu0 %v1181
        %v1318 = vpop.f32.mrf.mxu0
        %v1319 = vadd.f32 %v1230, %v1318
        %v1320 = vpop.f32.mrf.mxu0
        %1321 = vmatprep.mubr.f32.mxu0 0.0
        %1322 = vmatmul.mubr.f32.gmra.mxu0 %v1182
        %v1323 = vpop.f32.mrf.mxu0
        %v1324 = vadd.f32 %v1230, %v1323
        %v1325 = vpop.f32.mrf.mxu0
        %1326 = vmatprep.mubr.f32.mxu0 0.0
        %1327 = vmatmul.mubr.f32.gmra.mxu0 %v1183
        %v1328 = vpop.f32.mrf.mxu0
        %v1329 = vadd.f32 %v1230, %v1328
        %v1330 = vpop.f32.mrf.mxu0
        %1331 = vmatprep.mubr.f32.mxu0 0.0
        %1332 = vmatmul.mubr.f32.gmra.mxu0 %v1184
        %v1333 = vpop.f32.mrf.mxu0
        %v1334 = vadd.f32 %v1230, %v1333
        %v1335 = vpop.f32.mrf.mxu0
        %1336 = vmatprep.mubr.f32.mxu0 0.0
        %1337 = vmatmul.mubr.f32.gmra.mxu0 %v1185
        %v1338 = vpop.f32.mrf.mxu0
        %v1339 = vadd.f32 %v1230, %v1338
        %v1340 = vpop.f32.mrf.mxu0
        %1341 = vmatprep.mubr.f32.mxu0 0.0
        %1342 = vmatmul.mubr.f32.gmra.mxu0 %v1186
        %v1343 = vpop.f32.mrf.mxu0
        %v1344 = vadd.f32 %v1230, %v1343
        %v1345 = vpop.f32.mrf.mxu0
        %1346 = vmatprep.mubr.f32.mxu0 0.0
        %1347 = vmatmul.mubr.f32.gmra.mxu0 %v1187
        %v1348 = vpop.f32.mrf.mxu0
        %v1349 = vadd.f32 %v1230, %v1348
        %v1350 = vpop.f32.mrf.mxu0
        %1351 = vmatprep.mubr.f32.mxu0 0.0
        %1352 = vmatmul.mubr.f32.gmra.mxu0 %v1188
        %v1353 = vpop.f32.mrf.mxu0
        %v1354 = vadd.f32 %v1230, %v1353
        %v1355 = vpop.f32.mrf.mxu0
        %1356 = vmatprep.mubr.f32.mxu0 0.0
        %1357 = vmatmul.mubr.f32.gmra.mxu0 %v1189
        %v1358 = vpop.f32.mrf.mxu0
        %v1359 = vadd.f32 %v1230, %v1358
        %v1360 = vpop.f32.mrf.mxu0
        %1361 = vmatprep.mubr.f32.mxu0 0.0
        %1362 = vmatmul.mubr.f32.gmra.mxu0 %v1190
        %v1363 = vpop.f32.mrf.mxu0
        %v1364 = vadd.f32 %v1230, %v1363
        %v1365 = vpop.f32.mrf.mxu0
        %1366 = vmatprep.mubr.f32.mxu0 0.0
        %1367 = vmatmul.mubr.f32.gmra.mxu0 %v1191
        %v1368 = vpop.f32.mrf.mxu0
        %v1369 = vadd.f32 %v1230, %v1368
        %v1370 = vpop.f32.mrf.mxu0
        %1371 = vmatprep.mubr.f32.mxu0 0.0
        %1372 = vmatmul.mubr.f32.gmra.mxu0 %v1192
        %v1373 = vpop.f32.mrf.mxu0
        %v1374 = vadd.f32 %v1230, %v1373
        %v1375 = vpop.f32.mrf.mxu0
        %1376 = vmatprep.mubr.f32.mxu0 0.0
        %1377 = vmatmul.mubr.f32.gmra.mxu0 %v1193
        %v1378 = vpop.f32.mrf.mxu0
        %v1379 = vadd.f32 %v1230, %v1378
        %v1380 = vpop.f32.mrf.mxu0
        %1381 = vmatprep.mubr.f32.mxu0 0.0
        %1382 = vmatmul.mubr.f32.gmra.mxu0 %v1194
        %v1383 = vpop.f32.mrf.mxu0
        %v1384 = vadd.f32 %v1230, %v1383
        %v1385 = vpop.f32.mrf.mxu0
        %1386 = vmatprep.mubr.f32.mxu0 0.0
        %1387 = vmatmul.mubr.f32.gmra.mxu0 %v1195
        %v1388 = vpop.f32.mrf.mxu0
        %v1389 = vadd.f32 %v1230, %v1388
        %v1390 = vpop.f32.mrf.mxu0
        %1391 = vmatprep.mubr.f32.mxu0 0.0
        %1392 = vmatmul.mubr.f32.gmra.mxu0 %v1196
        %v1393 = vpop.f32.mrf.mxu0
        %v1394 = vadd.f32 %v1230, %v1393
        %v1395 = vpop.f32.mrf.mxu0
        %1396 = vmatprep.mubr.f32.mxu0 0.0
        %1397 = vmatmul.mubr.f32.gmra.mxu0 %v1197
        %v1398 = vpop.f32.mrf.mxu0
        %v1399 = vadd.f32 %v1230, %v1398
        %v1400 = vpop.f32.mrf.mxu0
        %1401 = vmatprep.mubr.f32.mxu0 0.0
        %1402 = vmatmul.mubr.f32.gmra.mxu0 %v1198
        %v1403 = vpop.f32.mrf.mxu0
        %v1404 = vadd.f32 %v1230, %v1403
        %v1405 = vpop.f32.mrf.mxu0
        %1406 = vmatprep.mubr.f32.mxu0 0.0
        %1407 = vmatmul.mubr.f32.gmra.mxu0 %v1199
        %v1408 = vpop.f32.mrf.mxu0
        %v1409 = vadd.f32 %v1230, %v1408
        %v1410 = vpop.f32.mrf.mxu0
        %1411 = vmatprep.mubr.f32.mxu0 0.0
        %1412 = vmatmul.mubr.f32.gmra.mxu0 %v1200
        %v1413 = vpop.f32.mrf.mxu0
        %v1414 = vadd.f32 %v1230, %v1413
        %v1415 = vpop.f32.mrf.mxu0
        %1416 = vmatprep.mubr.f32.mxu0 0.0
        %1417 = vmatmul.mubr.f32.gmra.mxu0 %v1201
        %v1418 = vpop.f32.mrf.mxu0
        %v1419 = vadd.f32 %v1230, %v1418
        %v1420 = vpop.f32.mrf.mxu0
        %1421 = vmatprep.mubr.f32.mxu0 0.0
        %1422 = vmatmul.mubr.f32.gmra.mxu0 %v1202
        %v1423 = vpop.f32.mrf.mxu0
        %v1424 = vadd.f32 %v1230, %v1423
        %v1425 = vpop.f32.mrf.mxu0
        %1426 = vmatprep.mubr.f32.mxu0 0.0
        %1427 = vmatmul.mubr.f32.gmra.mxu0 %v1203
        %v1428 = vpop.f32.mrf.mxu0
        %v1429 = vadd.f32 %v1230, %v1428
        %v1430 = vpop.f32.mrf.mxu0
        %1431 = vmatprep.mubr.f32.mxu0 0.0
        %1432 = vmatmul.mubr.f32.gmra.mxu0 %v1204
        %v1433 = vpop.f32.mrf.mxu0
        %v1434 = vadd.f32 %v1230, %v1433
        %v1435 = vpop.f32.mrf.mxu0
        %1436 = vmatprep.mubr.f32.mxu0 0.0
        %1437 = vmatmul.mubr.f32.gmra.mxu0 %v1205
        %v1438 = vpop.f32.mrf.mxu0
        %v1439 = vadd.f32 %v1230, %v1438
        %v1440 = vpop.f32.mrf.mxu0
        %1441 = vmatprep.mubr.f32.mxu0 0.0
        %1442 = vmatmul.mubr.f32.gmra.mxu0 %v1206
        %v1443 = vpop.f32.mrf.mxu0
        %v1444 = vadd.f32 %v1230, %v1443
        %v1445 = vpop.f32.mrf.mxu0
        %1446 = vmatprep.mubr.f32.mxu0 0.0
        %1447 = vmatmul.mubr.f32.gmra.mxu0 %v1207
        %v1448 = vpop.f32.mrf.mxu0
        %v1449 = vadd.f32 %v1230, %v1448
        %v1450 = vpop.f32.mrf.mxu0
        %1451 = vmatprep.mubr.f32.mxu0 0.0
        %1452 = vmatmul.mubr.f32.gmra.mxu0 %v1208
        %v1453 = vpop.f32.mrf.mxu0
        %v1454 = vadd.f32 %v1230, %v1453
        %v1455 = vpop.f32.mrf.mxu0
        %1456 = vdwg.mxu0
        %v1457 = vmax.f32 %v1299, 0.0
        %v1458 = vmax.f32 %v1304, 0.0
        %v1459 = vmax.f32 %v1309, 0.0
        %v1460 = vmax.f32 %v1314, 0.0
        %v1461 = vmax.f32 %v1319, 0.0
        %v1462 = vmax.f32 %v1324, 0.0
        %v1463 = vmax.f32 %v1329, 0.0
        %v1464 = vmax.f32 %v1334, 0.0
        %v1465 = vmax.f32 %v1339, 0.0
        %v1466 = vmax.f32 %v1344, 0.0
        %v1467 = vmax.f32 %v1349, 0.0
        %v1468 = vmax.f32 %v1354, 0.0
        %v1469 = vmax.f32 %v1359, 0.0
        %v1470 = vmax.f32 %v1364, 0.0
        %v1471 = vmax.f32 %v1369, 0.0
        %v1472 = vmax.f32 %v1374, 0.0
        %v1473 = vmax.f32 %v1379, 0.0
        %v1474 = vmax.f32 %v1384, 0.0
        %v1475 = vmax.f32 %v1389, 0.0
        %v1476 = vmax.f32 %v1394, 0.0
        %v1477 = vmax.f32 %v1399, 0.0
        %v1478 = vmax.f32 %v1404, 0.0
        %v1479 = vmax.f32 %v1409, 0.0
        %v1480 = vmax.f32 %v1414, 0.0
        %v1481 = vmax.f32 %v1419, 0.0
        %v1482 = vmax.f32 %v1424, 0.0
        %v1483 = vmax.f32 %v1429, 0.0
        %v1484 = vmax.f32 %v1434, 0.0
        %v1485 = vmax.f32 %v1439, 0.0
        %v1486 = vmax.f32 %v1444, 0.0
        %v1487 = vmax.f32 %v1449, 0.0
        %v1488 = vmax.f32 %v1454, 0.0
        %v1489 = vld [vmem:[#allocation10] sm:$0xff]
        %v1490 = vld [vmem:[#allocation10 + $0x8] sm:$0xff]
        %v1491 = vld [vmem:[#allocation10 + $0x10] sm:$0xff]
        %v1492 = vld [vmem:[#allocation10 + $0x18] sm:$0xff]
        %v1493 = vld [vmem:[#allocation10 + $0x20] sm:$0xff]
        %v1494 = vld [vmem:[#allocation10 + $0x28] sm:$0xff]
        %v1495 = vld [vmem:[#allocation10 + $0x30] sm:$0xff]
        %v1496 = vld [vmem:[#allocation10 + $0x38] sm:$0xff]
        %v1497 = vld [vmem:[#allocation10 + $0x40] sm:$0xff]
        %v1498 = vld [vmem:[#allocation10 + $0x48] sm:$0xff]
        %v1499 = vld [vmem:[#allocation10 + $0x50] sm:$0xff]
        %v1500 = vld [vmem:[#allocation10 + $0x58] sm:$0xff]
        %v1501 = vld [vmem:[#allocation10 + $0x60] sm:$0xff]
        %v1502 = vld [vmem:[#allocation10 + $0x68] sm:$0xff]
        %v1503 = vld [vmem:[#allocation10 + $0x70] sm:$0xff]
        %v1504 = vld [vmem:[#allocation10 + $0x78] sm:$0xff]
        %v1505 = vld [vmem:[%s8] sm:$0x1]
        %v1507 = vlaneseq
        %v1508 = vshrl.u32 %v1507, 7
        %v1509 = vsub.s32 0, %v1508
        %v1510 = vrot.slane %v1505, %v1509
        %1512 = vmatprep.subr.mxu0 0.0
        %1513 = vmatpush1.msra.mxu0 %v1504
        %1514 = vmatprep.subr.mxu0 0.0
        %1515 = vmatpush1.msra.mxu0 %v1503
        %1516 = vmatprep.subr.mxu0 0.0
        %1517 = vmatpush1.msra.mxu0 %v1502
        %1518 = vmatprep.subr.mxu0 0.0
        %1519 = vmatpush1.msra.mxu0 %v1501
        %1520 = vmatprep.subr.mxu0 0.0
        %1521 = vmatpush1.msra.mxu0 %v1500
        %1522 = vmatprep.subr.mxu0 0.0
        %1523 = vmatpush1.msra.mxu0 %v1499
        %1524 = vmatprep.subr.mxu0 0.0
        %1525 = vmatpush1.msra.mxu0 %v1498
        %1526 = vmatprep.subr.mxu0 0.0
        %1527 = vmatpush1.msra.mxu0 %v1497
        %1528 = vmatprep.subr.mxu0 0.0
        %1529 = vmatpush1.msra.mxu0 %v1496
        %1530 = vmatprep.subr.mxu0 0.0
        %1531 = vmatpush1.msra.mxu0 %v1495
        %1532 = vmatprep.subr.mxu0 0.0
        %1533 = vmatpush1.msra.mxu0 %v1494
        %1534 = vmatprep.subr.mxu0 0.0
        %1535 = vmatpush1.msra.mxu0 %v1493
        %1536 = vmatprep.subr.mxu0 0.0
        %1537 = vmatpush1.msra.mxu0 %v1492
        %1538 = vmatprep.subr.mxu0 0.0
        %1539 = vmatpush1.msra.mxu0 %v1491
        %1540 = vmatprep.subr.mxu0 0.0
        %1541 = vmatpush1.msra.mxu0 %v1490
        %1542 = vmatprep.subr.mxu0 0.0
        %1543 = vmatpush1.msra.mxu0 %v1489
        %1544 = vmatprep.subr.mxu0 0.0
        %1545 = vmatpush2.msra.mxu0 0.0
        %1546 = vmatprep.subr.mxu0 0.0
        %1547 = vmatpush2.msra.mxu0 0.0
        %1548 = vmatprep.subr.mxu0 0.0
        %1549 = vmatpush2.msra.mxu0 0.0
        %1550 = vmatprep.subr.mxu0 0.0
        %1551 = vmatpush2.msra.mxu0 0.0
        %1552 = vmatprep.subr.mxu0 0.0
        %1553 = vmatpush2.msra.mxu0 0.0
        %1554 = vmatprep.subr.mxu0 0.0
        %1555 = vmatpush2.msra.mxu0 0.0
        %1556 = vmatprep.subr.mxu0 0.0
        %1557 = vmatpush2.msra.mxu0 0.0
        %1558 = vmatprep.subr.mxu0 0.0
        %1559 = vmatpush2.msra.mxu0 0.0
        %1560 = vmatprep.subr.mxu0 0.0
        %1561 = vmatpush2.msra.mxu0 0.0
        %1562 = vmatprep.subr.mxu0 0.0
        %1563 = vmatpush2.msra.mxu0 0.0
        %1564 = vmatprep.subr.mxu0 0.0
        %1565 = vmatpush2.msra.mxu0 0.0
        %1566 = vmatprep.subr.mxu0 0.0
        %1567 = vmatpush2.msra.mxu0 0.0
        %1568 = vmatprep.subr.mxu0 0.0
        %1569 = vmatpush2.msra.mxu0 0.0
        %1570 = vmatprep.subr.mxu0 0.0
        %1571 = vmatpush2.msra.mxu0 0.0
        %1572 = vmatprep.subr.mxu0 0.0
        %1573 = vmatpush2.msra.mxu0 0.0
        %1574 = vmatprep.subr.mxu0 0.0
        %1575 = vmatpush2.msra.mxu0 0.0
        %1576 = vmatprep.mubr.f32.mxu0 0.0
        %1577 = vmatmul.mubr.f32.gmra.mxu0 %v1457
        %v1578 = vpop.f32.mrf.mxu0
        %v1579 = vadd.f32 %v1510, %v1578
        %v1580 = vpop.f32.mrf.mxu0
        %1581 = vmatprep.mubr.f32.mxu0 0.0
        %1582 = vmatmul.mubr.f32.gmra.mxu0 %v1458
        %v1583 = vpop.f32.mrf.mxu0
        %v1584 = vadd.f32 %v1510, %v1583
        %v1585 = vpop.f32.mrf.mxu0
        %1586 = vmatprep.mubr.f32.mxu0 0.0
        %1587 = vmatmul.mubr.f32.gmra.mxu0 %v1459
        %v1588 = vpop.f32.mrf.mxu0
        %v1589 = vadd.f32 %v1510, %v1588
        %v1590 = vpop.f32.mrf.mxu0
        %1591 = vmatprep.mubr.f32.mxu0 0.0
        %1592 = vmatmul.mubr.f32.gmra.mxu0 %v1460
        %v1593 = vpop.f32.mrf.mxu0
        %v1594 = vadd.f32 %v1510, %v1593
        %v1595 = vpop.f32.mrf.mxu0
        %1596 = vmatprep.mubr.f32.mxu0 0.0
        %1597 = vmatmul.mubr.f32.gmra.mxu0 %v1461
        %v1598 = vpop.f32.mrf.mxu0
        %v1599 = vadd.f32 %v1510, %v1598
        %v1600 = vpop.f32.mrf.mxu0
        %1601 = vmatprep.mubr.f32.mxu0 0.0
        %1602 = vmatmul.mubr.f32.gmra.mxu0 %v1462
        %v1603 = vpop.f32.mrf.mxu0
        %v1604 = vadd.f32 %v1510, %v1603
        %v1605 = vpop.f32.mrf.mxu0
        %1606 = vmatprep.mubr.f32.mxu0 0.0
        %1607 = vmatmul.mubr.f32.gmra.mxu0 %v1463
        %v1608 = vpop.f32.mrf.mxu0
        %v1609 = vadd.f32 %v1510, %v1608
        %v1610 = vpop.f32.mrf.mxu0
        %1611 = vmatprep.mubr.f32.mxu0 0.0
        %1612 = vmatmul.mubr.f32.gmra.mxu0 %v1464
        %v1613 = vpop.f32.mrf.mxu0
        %v1614 = vadd.f32 %v1510, %v1613
        %v1615 = vpop.f32.mrf.mxu0
        %1616 = vmatprep.mubr.f32.mxu0 0.0
        %1617 = vmatmul.mubr.f32.gmra.mxu0 %v1465
        %v1618 = vpop.f32.mrf.mxu0
        %v1619 = vadd.f32 %v1510, %v1618
        %v1620 = vpop.f32.mrf.mxu0
        %1621 = vmatprep.mubr.f32.mxu0 0.0
        %1622 = vmatmul.mubr.f32.gmra.mxu0 %v1466
        %v1623 = vpop.f32.mrf.mxu0
        %v1624 = vadd.f32 %v1510, %v1623
        %v1625 = vpop.f32.mrf.mxu0
        %1626 = vmatprep.mubr.f32.mxu0 0.0
        %1627 = vmatmul.mubr.f32.gmra.mxu0 %v1467
        %v1628 = vpop.f32.mrf.mxu0
        %v1629 = vadd.f32 %v1510, %v1628
        %v1630 = vpop.f32.mrf.mxu0
        %1631 = vmatprep.mubr.f32.mxu0 0.0
        %1632 = vmatmul.mubr.f32.gmra.mxu0 %v1468
        %v1633 = vpop.f32.mrf.mxu0
        %v1634 = vadd.f32 %v1510, %v1633
        %v1635 = vpop.f32.mrf.mxu0
        %1636 = vmatprep.mubr.f32.mxu0 0.0
        %1637 = vmatmul.mubr.f32.gmra.mxu0 %v1469
        %v1638 = vpop.f32.mrf.mxu0
        %v1639 = vadd.f32 %v1510, %v1638
        %v1640 = vpop.f32.mrf.mxu0
        %1641 = vmatprep.mubr.f32.mxu0 0.0
        %1642 = vmatmul.mubr.f32.gmra.mxu0 %v1470
        %v1643 = vpop.f32.mrf.mxu0
        %v1644 = vadd.f32 %v1510, %v1643
        %v1645 = vpop.f32.mrf.mxu0
        %1646 = vmatprep.mubr.f32.mxu0 0.0
        %1647 = vmatmul.mubr.f32.gmra.mxu0 %v1471
        %v1648 = vpop.f32.mrf.mxu0
        %v1649 = vadd.f32 %v1510, %v1648
        %v1650 = vpop.f32.mrf.mxu0
        %1651 = vmatprep.mubr.f32.mxu0 0.0
        %1652 = vmatmul.mubr.f32.gmra.mxu0 %v1472
        %v1653 = vpop.f32.mrf.mxu0
        %v1654 = vadd.f32 %v1510, %v1653
        %v1655 = vpop.f32.mrf.mxu0
        %1656 = vmatprep.mubr.f32.mxu0 0.0
        %1657 = vmatmul.mubr.f32.gmra.mxu0 %v1473
        %v1658 = vpop.f32.mrf.mxu0
        %v1659 = vadd.f32 %v1510, %v1658
        %v1660 = vpop.f32.mrf.mxu0
        %1661 = vmatprep.mubr.f32.mxu0 0.0
        %1662 = vmatmul.mubr.f32.gmra.mxu0 %v1474
        %v1663 = vpop.f32.mrf.mxu0
        %v1664 = vadd.f32 %v1510, %v1663
        %v1665 = vpop.f32.mrf.mxu0
        %1666 = vmatprep.mubr.f32.mxu0 0.0
        %1667 = vmatmul.mubr.f32.gmra.mxu0 %v1475
        %v1668 = vpop.f32.mrf.mxu0
        %v1669 = vadd.f32 %v1510, %v1668
        %v1670 = vpop.f32.mrf.mxu0
        %1671 = vmatprep.mubr.f32.mxu0 0.0
        %1672 = vmatmul.mubr.f32.gmra.mxu0 %v1476
        %v1673 = vpop.f32.mrf.mxu0
        %v1674 = vadd.f32 %v1510, %v1673
        %v1675 = vpop.f32.mrf.mxu0
        %1676 = vmatprep.mubr.f32.mxu0 0.0
        %1677 = vmatmul.mubr.f32.gmra.mxu0 %v1477
        %v1678 = vpop.f32.mrf.mxu0
        %v1679 = vadd.f32 %v1510, %v1678
        %v1680 = vpop.f32.mrf.mxu0
        %1681 = vmatprep.mubr.f32.mxu0 0.0
        %1682 = vmatmul.mubr.f32.gmra.mxu0 %v1478
        %v1683 = vpop.f32.mrf.mxu0
        %v1684 = vadd.f32 %v1510, %v1683
        %v1685 = vpop.f32.mrf.mxu0
        %1686 = vmatprep.mubr.f32.mxu0 0.0
        %1687 = vmatmul.mubr.f32.gmra.mxu0 %v1479
        %v1688 = vpop.f32.mrf.mxu0
        %v1689 = vadd.f32 %v1510, %v1688
        %v1690 = vpop.f32.mrf.mxu0
        %1691 = vmatprep.mubr.f32.mxu0 0.0
        %1692 = vmatmul.mubr.f32.gmra.mxu0 %v1480
        %v1693 = vpop.f32.mrf.mxu0
        %v1694 = vadd.f32 %v1510, %v1693
        %v1695 = vpop.f32.mrf.mxu0
        %1696 = vmatprep.mubr.f32.mxu0 0.0
        %1697 = vmatmul.mubr.f32.gmra.mxu0 %v1481
        %v1698 = vpop.f32.mrf.mxu0
        %v1699 = vadd.f32 %v1510, %v1698
        %v1700 = vpop.f32.mrf.mxu0
        %1701 = vmatprep.mubr.f32.mxu0 0.0
        %1702 = vmatmul.mubr.f32.gmra.mxu0 %v1482
        %v1703 = vpop.f32.mrf.mxu0
        %v1704 = vadd.f32 %v1510, %v1703
        %v1705 = vpop.f32.mrf.mxu0
        %1706 = vmatprep.mubr.f32.mxu0 0.0
        %1707 = vmatmul.mubr.f32.gmra.mxu0 %v1483
        %v1708 = vpop.f32.mrf.mxu0
        %v1709 = vadd.f32 %v1510, %v1708
        %v1710 = vpop.f32.mrf.mxu0
        %1711 = vmatprep.mubr.f32.mxu0 0.0
        %1712 = vmatmul.mubr.f32.gmra.mxu0 %v1484
        %v1713 = vpop.f32.mrf.mxu0
        %v1714 = vadd.f32 %v1510, %v1713
        %v1715 = vpop.f32.mrf.mxu0
        %1716 = vmatprep.mubr.f32.mxu0 0.0
        %1717 = vmatmul.mubr.f32.gmra.mxu0 %v1485
        %v1718 = vpop.f32.mrf.mxu0
        %v1719 = vadd.f32 %v1510, %v1718
        %v1720 = vpop.f32.mrf.mxu0
        %1721 = vmatprep.mubr.f32.mxu0 0.0
        %1722 = vmatmul.mubr.f32.gmra.mxu0 %v1486
        %v1723 = vpop.f32.mrf.mxu0
        %v1724 = vadd.f32 %v1510, %v1723
        %v1725 = vpop.f32.mrf.mxu0
        %1726 = vmatprep.mubr.f32.mxu0 0.0
        %1727 = vmatmul.mubr.f32.gmra.mxu0 %v1487
        %v1728 = vpop.f32.mrf.mxu0
        %v1729 = vadd.f32 %v1510, %v1728
        %v1730 = vpop.f32.mrf.mxu0
        %1731 = vmatprep.mubr.f32.mxu0 0.0
        %1732 = vmatmul.mubr.f32.gmra.mxu0 %v1488
        %v1733 = vpop.f32.mrf.mxu0
        %v1734 = vadd.f32 %v1510, %v1733
        %v1735 = vpop.f32.mrf.mxu0
        %1736 = vdwg.mxu0
        %v1737 = vmax.f32 %v1579, 0.0
        %v1738 = vmax.f32 %v1584, 0.0
        %v1739 = vmax.f32 %v1589, 0.0
        %v1740 = vmax.f32 %v1594, 0.0
        %v1741 = vmax.f32 %v1599, 0.0
        %v1742 = vmax.f32 %v1604, 0.0
        %v1743 = vmax.f32 %v1609, 0.0
        %v1744 = vmax.f32 %v1614, 0.0
        %v1745 = vmax.f32 %v1619, 0.0
        %v1746 = vmax.f32 %v1624, 0.0
        %v1747 = vmax.f32 %v1629, 0.0
        %v1748 = vmax.f32 %v1634, 0.0
        %v1749 = vmax.f32 %v1639, 0.0
        %v1750 = vmax.f32 %v1644, 0.0
        %v1751 = vmax.f32 %v1649, 0.0
        %v1752 = vmax.f32 %v1654, 0.0
        %v1753 = vmax.f32 %v1659, 0.0
        %v1754 = vmax.f32 %v1664, 0.0
        %v1755 = vmax.f32 %v1669, 0.0
        %v1756 = vmax.f32 %v1674, 0.0
        %v1757 = vmax.f32 %v1679, 0.0
        %v1758 = vmax.f32 %v1684, 0.0
        %v1759 = vmax.f32 %v1689, 0.0
        %v1760 = vmax.f32 %v1694, 0.0
        %v1761 = vmax.f32 %v1699, 0.0
        %v1762 = vmax.f32 %v1704, 0.0
        %v1763 = vmax.f32 %v1709, 0.0
        %v1764 = vmax.f32 %v1714, 0.0
        %v1765 = vmax.f32 %v1719, 0.0
        %v1766 = vmax.f32 %v1724, 0.0
        %v1767 = vmax.f32 %v1729, 0.0
        %v1768 = vmax.f32 %v1734, 0.0
        %v1769 = vld [vmem:[#allocation11] sm:$0xff]
        %v1770 = vld [vmem:[#allocation11 + $0x8] sm:$0xff]
        %v1771 = vld [vmem:[#allocation11 + $0x10] sm:$0xff]
        %v1772 = vld [vmem:[#allocation11 + $0x18] sm:$0xff]
        %v1773 = vld [vmem:[#allocation11 + $0x20] sm:$0xff]
        %v1774 = vld [vmem:[#allocation11 + $0x28] sm:$0xff]
        %v1775 = vld [vmem:[#allocation11 + $0x30] sm:$0xff]
        %v1776 = vld [vmem:[#allocation11 + $0x38] sm:$0xff]
        %v1777 = vld [vmem:[#allocation11 + $0x40] sm:$0xff]
        %v1778 = vld [vmem:[#allocation11 + $0x48] sm:$0xff]
        %v1779 = vld [vmem:[#allocation11 + $0x50] sm:$0xff]
        %v1780 = vld [vmem:[#allocation11 + $0x58] sm:$0xff]
        %v1781 = vld [vmem:[#allocation11 + $0x60] sm:$0xff]
        %v1782 = vld [vmem:[#allocation11 + $0x68] sm:$0xff]
        %v1783 = vld [vmem:[#allocation11 + $0x70] sm:$0xff]
        %v1784 = vld [vmem:[#allocation11 + $0x78] sm:$0xff]
        %v1785 = vld [vmem:[%s10] sm:$0x1]
        %v1787 = vlaneseq
        %v1788 = vshrl.u32 %v1787, 7
        %v1789 = vsub.s32 0, %v1788
        %v1790 = vrot.slane %v1785, %v1789
        %1792 = vmatprep.subr.mxu0 0.0
        %1793 = vmatpush1.msra.mxu0 %v1784
        %1794 = vmatprep.subr.mxu0 0.0
        %1795 = vmatpush1.msra.mxu0 %v1783
        %1796 = vmatprep.subr.mxu0 0.0
        %1797 = vmatpush1.msra.mxu0 %v1782
        %1798 = vmatprep.subr.mxu0 0.0
        %1799 = vmatpush1.msra.mxu0 %v1781
        %1800 = vmatprep.subr.mxu0 0.0
        %1801 = vmatpush1.msra.mxu0 %v1780
        %1802 = vmatprep.subr.mxu0 0.0
        %1803 = vmatpush1.msra.mxu0 %v1779
        %1804 = vmatprep.subr.mxu0 0.0
        %1805 = vmatpush1.msra.mxu0 %v1778
        %1806 = vmatprep.subr.mxu0 0.0
        %1807 = vmatpush1.msra.mxu0 %v1777
        %1808 = vmatprep.subr.mxu0 0.0
        %1809 = vmatpush1.msra.mxu0 %v1776
        %1810 = vmatprep.subr.mxu0 0.0
        %1811 = vmatpush1.msra.mxu0 %v1775
        %1812 = vmatprep.subr.mxu0 0.0
        %1813 = vmatpush1.msra.mxu0 %v1774
        %1814 = vmatprep.subr.mxu0 0.0
        %1815 = vmatpush1.msra.mxu0 %v1773
        %1816 = vmatprep.subr.mxu0 0.0
        %1817 = vmatpush1.msra.mxu0 %v1772
        %1818 = vmatprep.subr.mxu0 0.0
        %1819 = vmatpush1.msra.mxu0 %v1771
        %1820 = vmatprep.subr.mxu0 0.0
        %1821 = vmatpush1.msra.mxu0 %v1770
        %1822 = vmatprep.subr.mxu0 0.0
        %1823 = vmatpush1.msra.mxu0 %v1769
        %1824 = vmatprep.subr.mxu0 0.0
        %1825 = vmatpush2.msra.mxu0 0.0
        %1826 = vmatprep.subr.mxu0 0.0
        %1827 = vmatpush2.msra.mxu0 0.0
        %1828 = vmatprep.subr.mxu0 0.0
        %1829 = vmatpush2.msra.mxu0 0.0
        %1830 = vmatprep.subr.mxu0 0.0
        %1831 = vmatpush2.msra.mxu0 0.0
        %1832 = vmatprep.subr.mxu0 0.0
        %1833 = vmatpush2.msra.mxu0 0.0
        %1834 = vmatprep.subr.mxu0 0.0
        %1835 = vmatpush2.msra.mxu0 0.0
        %1836 = vmatprep.subr.mxu0 0.0
        %1837 = vmatpush2.msra.mxu0 0.0
        %1838 = vmatprep.subr.mxu0 0.0
        %1839 = vmatpush2.msra.mxu0 0.0
        %1840 = vmatprep.subr.mxu0 0.0
        %1841 = vmatpush2.msra.mxu0 0.0
        %1842 = vmatprep.subr.mxu0 0.0
        %1843 = vmatpush2.msra.mxu0 0.0
        %1844 = vmatprep.subr.mxu0 0.0
        %1845 = vmatpush2.msra.mxu0 0.0
        %1846 = vmatprep.subr.mxu0 0.0
        %1847 = vmatpush2.msra.mxu0 0.0
        %1848 = vmatprep.subr.mxu0 0.0
        %1849 = vmatpush2.msra.mxu0 0.0
        %1850 = vmatprep.subr.mxu0 0.0
        %1851 = vmatpush2.msra.mxu0 0.0
        %1852 = vmatprep.subr.mxu0 0.0
        %1853 = vmatpush2.msra.mxu0 0.0
        %1854 = vmatprep.subr.mxu0 0.0
        %1855 = vmatpush2.msra.mxu0 0.0
        %1856 = vmatprep.mubr.f32.mxu0 0.0
        %1857 = vmatmul.mubr.f32.gmra.mxu0 %v1737
        %v1858 = vpop.f32.mrf.mxu0
        %v1859 = vadd.f32 %v1790, %v1858
        %v1860 = vpop.f32.mrf.mxu0
        %1861 = vmatprep.mubr.f32.mxu0 0.0
        %1862 = vmatmul.mubr.f32.gmra.mxu0 %v1738
        %v1863 = vpop.f32.mrf.mxu0
        %v1864 = vadd.f32 %v1790, %v1863
        %v1865 = vpop.f32.mrf.mxu0
        %1866 = vmatprep.mubr.f32.mxu0 0.0
        %1867 = vmatmul.mubr.f32.gmra.mxu0 %v1739
        %v1868 = vpop.f32.mrf.mxu0
        %v1869 = vadd.f32 %v1790, %v1868
        %v1870 = vpop.f32.mrf.mxu0
        %1871 = vmatprep.mubr.f32.mxu0 0.0
        %1872 = vmatmul.mubr.f32.gmra.mxu0 %v1740
        %v1873 = vpop.f32.mrf.mxu0
        %v1874 = vadd.f32 %v1790, %v1873
        %v1875 = vpop.f32.mrf.mxu0
        %1876 = vmatprep.mubr.f32.mxu0 0.0
        %1877 = vmatmul.mubr.f32.gmra.mxu0 %v1741
        %v1878 = vpop.f32.mrf.mxu0
        %v1879 = vadd.f32 %v1790, %v1878
        %v1880 = vpop.f32.mrf.mxu0
        %1881 = vmatprep.mubr.f32.mxu0 0.0
        %1882 = vmatmul.mubr.f32.gmra.mxu0 %v1742
        %v1883 = vpop.f32.mrf.mxu0
        %v1884 = vadd.f32 %v1790, %v1883
        %v1885 = vpop.f32.mrf.mxu0
        %1886 = vmatprep.mubr.f32.mxu0 0.0
        %1887 = vmatmul.mubr.f32.gmra.mxu0 %v1743
        %v1888 = vpop.f32.mrf.mxu0
        %v1889 = vadd.f32 %v1790, %v1888
        %v1890 = vpop.f32.mrf.mxu0
        %1891 = vmatprep.mubr.f32.mxu0 0.0
        %1892 = vmatmul.mubr.f32.gmra.mxu0 %v1744
        %v1893 = vpop.f32.mrf.mxu0
        %v1894 = vadd.f32 %v1790, %v1893
        %v1895 = vpop.f32.mrf.mxu0
        %1896 = vmatprep.mubr.f32.mxu0 0.0
        %1897 = vmatmul.mubr.f32.gmra.mxu0 %v1745
        %v1898 = vpop.f32.mrf.mxu0
        %v1899 = vadd.f32 %v1790, %v1898
        %v1900 = vpop.f32.mrf.mxu0
        %1901 = vmatprep.mubr.f32.mxu0 0.0
        %1902 = vmatmul.mubr.f32.gmra.mxu0 %v1746
        %v1903 = vpop.f32.mrf.mxu0
        %v1904 = vadd.f32 %v1790, %v1903
        %v1905 = vpop.f32.mrf.mxu0
        %1906 = vmatprep.mubr.f32.mxu0 0.0
        %1907 = vmatmul.mubr.f32.gmra.mxu0 %v1747
        %v1908 = vpop.f32.mrf.mxu0
        %v1909 = vadd.f32 %v1790, %v1908
        %v1910 = vpop.f32.mrf.mxu0
        %1911 = vmatprep.mubr.f32.mxu0 0.0
        %1912 = vmatmul.mubr.f32.gmra.mxu0 %v1748
        %v1913 = vpop.f32.mrf.mxu0
        %v1914 = vadd.f32 %v1790, %v1913
        %v1915 = vpop.f32.mrf.mxu0
        %1916 = vmatprep.mubr.f32.mxu0 0.0
        %1917 = vmatmul.mubr.f32.gmra.mxu0 %v1749
        %v1918 = vpop.f32.mrf.mxu0
        %v1919 = vadd.f32 %v1790, %v1918
        %v1920 = vpop.f32.mrf.mxu0
        %1921 = vmatprep.mubr.f32.mxu0 0.0
        %1922 = vmatmul.mubr.f32.gmra.mxu0 %v1750
        %v1923 = vpop.f32.mrf.mxu0
        %v1924 = vadd.f32 %v1790, %v1923
        %v1925 = vpop.f32.mrf.mxu0
        %1926 = vmatprep.mubr.f32.mxu0 0.0
        %1927 = vmatmul.mubr.f32.gmra.mxu0 %v1751
        %v1928 = vpop.f32.mrf.mxu0
        %v1929 = vadd.f32 %v1790, %v1928
        %v1930 = vpop.f32.mrf.mxu0
        %1931 = vmatprep.mubr.f32.mxu0 0.0
        %1932 = vmatmul.mubr.f32.gmra.mxu0 %v1752
        %v1933 = vpop.f32.mrf.mxu0
        %v1934 = vadd.f32 %v1790, %v1933
        %v1935 = vpop.f32.mrf.mxu0
        %1936 = vmatprep.mubr.f32.mxu0 0.0
        %1937 = vmatmul.mubr.f32.gmra.mxu0 %v1753
        %v1938 = vpop.f32.mrf.mxu0
        %v1939 = vadd.f32 %v1790, %v1938
        %v1940 = vpop.f32.mrf.mxu0
        %1941 = vmatprep.mubr.f32.mxu0 0.0
        %1942 = vmatmul.mubr.f32.gmra.mxu0 %v1754
        %v1943 = vpop.f32.mrf.mxu0
        %v1944 = vadd.f32 %v1790, %v1943
        %v1945 = vpop.f32.mrf.mxu0
        %1946 = vmatprep.mubr.f32.mxu0 0.0
        %1947 = vmatmul.mubr.f32.gmra.mxu0 %v1755
        %v1948 = vpop.f32.mrf.mxu0
        %v1949 = vadd.f32 %v1790, %v1948
        %v1950 = vpop.f32.mrf.mxu0
        %1951 = vmatprep.mubr.f32.mxu0 0.0
        %1952 = vmatmul.mubr.f32.gmra.mxu0 %v1756
        %v1953 = vpop.f32.mrf.mxu0
        %v1954 = vadd.f32 %v1790, %v1953
        %v1955 = vpop.f32.mrf.mxu0
        %1956 = vmatprep.mubr.f32.mxu0 0.0
        %1957 = vmatmul.mubr.f32.gmra.mxu0 %v1757
        %v1958 = vpop.f32.mrf.mxu0
        %v1959 = vadd.f32 %v1790, %v1958
        %v1960 = vpop.f32.mrf.mxu0
        %1961 = vmatprep.mubr.f32.mxu0 0.0
        %1962 = vmatmul.mubr.f32.gmra.mxu0 %v1758
        %v1963 = vpop.f32.mrf.mxu0
        %v1964 = vadd.f32 %v1790, %v1963
        %v1965 = vpop.f32.mrf.mxu0
        %1966 = vmatprep.mubr.f32.mxu0 0.0
        %1967 = vmatmul.mubr.f32.gmra.mxu0 %v1759
        %v1968 = vpop.f32.mrf.mxu0
        %v1969 = vadd.f32 %v1790, %v1968
        %v1970 = vpop.f32.mrf.mxu0
        %1971 = vmatprep.mubr.f32.mxu0 0.0
        %1972 = vmatmul.mubr.f32.gmra.mxu0 %v1760
        %v1973 = vpop.f32.mrf.mxu0
        %v1974 = vadd.f32 %v1790, %v1973
        %v1975 = vpop.f32.mrf.mxu0
        %1976 = vmatprep.mubr.f32.mxu0 0.0
        %1977 = vmatmul.mubr.f32.gmra.mxu0 %v1761
        %v1978 = vpop.f32.mrf.mxu0
        %v1979 = vadd.f32 %v1790, %v1978
        %v1980 = vpop.f32.mrf.mxu0
        %1981 = vmatprep.mubr.f32.mxu0 0.0
        %1982 = vmatmul.mubr.f32.gmra.mxu0 %v1762
        %v1983 = vpop.f32.mrf.mxu0
        %v1984 = vadd.f32 %v1790, %v1983
        %v1985 = vpop.f32.mrf.mxu0
        %1986 = vmatprep.mubr.f32.mxu0 0.0
        %1987 = vmatmul.mubr.f32.gmra.mxu0 %v1763
        %v1988 = vpop.f32.mrf.mxu0
        %v1989 = vadd.f32 %v1790, %v1988
        %v1990 = vpop.f32.mrf.mxu0
        %1991 = vmatprep.mubr.f32.mxu0 0.0
        %1992 = vmatmul.mubr.f32.gmra.mxu0 %v1764
        %v1993 = vpop.f32.mrf.mxu0
        %v1994 = vadd.f32 %v1790, %v1993
        %v1995 = vpop.f32.mrf.mxu0
        %1996 = vmatprep.mubr.f32.mxu0 0.0
        %1997 = vmatmul.mubr.f32.gmra.mxu0 %v1765
        %v1998 = vpop.f32.mrf.mxu0
        %v1999 = vadd.f32 %v1790, %v1998
        %v2000 = vpop.f32.mrf.mxu0
        %2001 = vmatprep.mubr.f32.mxu0 0.0
        %2002 = vmatmul.mubr.f32.gmra.mxu0 %v1766
        %v2003 = vpop.f32.mrf.mxu0
        %v2004 = vadd.f32 %v1790, %v2003
        %v2005 = vpop.f32.mrf.mxu0
        %2006 = vmatprep.mubr.f32.mxu0 0.0
        %2007 = vmatmul.mubr.f32.gmra.mxu0 %v1767
        %v2008 = vpop.f32.mrf.mxu0
        %v2009 = vadd.f32 %v1790, %v2008
        %v2010 = vpop.f32.mrf.mxu0
        %2011 = vmatprep.mubr.f32.mxu0 0.0
        %2012 = vmatmul.mubr.f32.gmra.mxu0 %v1768
        %v2013 = vpop.f32.mrf.mxu0
        %v2014 = vadd.f32 %v1790, %v2013
        %v2015 = vpop.f32.mrf.mxu0
        %2016 = vdwg.mxu0
        %v2017 = vmax.f32 %v1859, 0.0
        %v2018 = vmax.f32 %v1864, 0.0
        %v2019 = vmax.f32 %v1869, 0.0
        %v2020 = vmax.f32 %v1874, 0.0
        %v2021 = vmax.f32 %v1879, 0.0
        %v2022 = vmax.f32 %v1884, 0.0
        %v2023 = vmax.f32 %v1889, 0.0
        %v2024 = vmax.f32 %v1894, 0.0
        %v2025 = vmax.f32 %v1899, 0.0
        %v2026 = vmax.f32 %v1904, 0.0
        %v2027 = vmax.f32 %v1909, 0.0
        %v2028 = vmax.f32 %v1914, 0.0
        %v2029 = vmax.f32 %v1919, 0.0
        %v2030 = vmax.f32 %v1924, 0.0
        %v2031 = vmax.f32 %v1929, 0.0
        %v2032 = vmax.f32 %v1934, 0.0
        %v2033 = vmax.f32 %v1939, 0.0
        %v2034 = vmax.f32 %v1944, 0.0
        %v2035 = vmax.f32 %v1949, 0.0
        %v2036 = vmax.f32 %v1954, 0.0
        %v2037 = vmax.f32 %v1959, 0.0
        %v2038 = vmax.f32 %v1964, 0.0
        %v2039 = vmax.f32 %v1969, 0.0
        %v2040 = vmax.f32 %v1974, 0.0
        %v2041 = vmax.f32 %v1979, 0.0
        %v2042 = vmax.f32 %v1984, 0.0
        %v2043 = vmax.f32 %v1989, 0.0
        %v2044 = vmax.f32 %v1994, 0.0
        %v2045 = vmax.f32 %v1999, 0.0
        %v2046 = vmax.f32 %v2004, 0.0
        %v2047 = vmax.f32 %v2009, 0.0
        %v2048 = vmax.f32 %v2014, 0.0
        %v2049 = vld [vmem:[#allocation13] sm:$0xff]
        %v2050 = vld [vmem:[#allocation13 + $0x8] sm:$0xff]
        %v2051 = vld [vmem:[#allocation13 + $0x10] sm:$0xff]
        %v2052 = vld [vmem:[#allocation13 + $0x18] sm:$0xff]
        %v2053 = vld [vmem:[#allocation13 + $0x20] sm:$0xff]
        %v2054 = vld [vmem:[#allocation13 + $0x28] sm:$0xff]
        %v2055 = vld [vmem:[#allocation13 + $0x30] sm:$0xff]
        %v2056 = vld [vmem:[#allocation13 + $0x38] sm:$0xff]
        %v2057 = vld [vmem:[#allocation13 + $0x40] sm:$0xff]
        %v2058 = vld [vmem:[#allocation13 + $0x48] sm:$0xff]
        %v2059 = vld [vmem:[#allocation13 + $0x50] sm:$0xff]
        %v2060 = vld [vmem:[#allocation13 + $0x58] sm:$0xff]
        %v2061 = vld [vmem:[#allocation13 + $0x60] sm:$0xff]
        %v2062 = vld [vmem:[#allocation13 + $0x68] sm:$0xff]
        %v2063 = vld [vmem:[#allocation13 + $0x70] sm:$0xff]
        %v2064 = vld [vmem:[#allocation13 + $0x78] sm:$0xff]
        %v2065 = vld [vmem:[%s12] sm:$0x1]
        %v2067 = vlaneseq
        %v2068 = vshrl.u32 %v2067, 7
        %v2069 = vsub.s32 0, %v2068
        %v2070 = vrot.slane %v2065, %v2069
        %2072 = vmatprep.subr.mxu0 0.0
        %2073 = vmatpush1.msra.mxu0 %v2064
        %2074 = vmatprep.subr.mxu0 0.0
        %2075 = vmatpush1.msra.mxu0 %v2063
        %2076 = vmatprep.subr.mxu0 0.0
        %2077 = vmatpush1.msra.mxu0 %v2062
        %2078 = vmatprep.subr.mxu0 0.0
        %2079 = vmatpush1.msra.mxu0 %v2061
        %2080 = vmatprep.subr.mxu0 0.0
        %2081 = vmatpush1.msra.mxu0 %v2060
        %2082 = vmatprep.subr.mxu0 0.0
        %2083 = vmatpush1.msra.mxu0 %v2059
        %2084 = vmatprep.subr.mxu0 0.0
        %2085 = vmatpush1.msra.mxu0 %v2058
        %2086 = vmatprep.subr.mxu0 0.0
        %2087 = vmatpush1.msra.mxu0 %v2057
        %2088 = vmatprep.subr.mxu0 0.0
        %2089 = vmatpush1.msra.mxu0 %v2056
        %2090 = vmatprep.subr.mxu0 0.0
        %2091 = vmatpush1.msra.mxu0 %v2055
        %2092 = vmatprep.subr.mxu0 0.0
        %2093 = vmatpush1.msra.mxu0 %v2054
        %2094 = vmatprep.subr.mxu0 0.0
        %2095 = vmatpush1.msra.mxu0 %v2053
        %2096 = vmatprep.subr.mxu0 0.0
        %2097 = vmatpush1.msra.mxu0 %v2052
        %2098 = vmatprep.subr.mxu0 0.0
        %2099 = vmatpush1.msra.mxu0 %v2051
        %2100 = vmatprep.subr.mxu0 0.0
        %2101 = vmatpush1.msra.mxu0 %v2050
        %2102 = vmatprep.subr.mxu0 0.0
        %2103 = vmatpush1.msra.mxu0 %v2049
        %2104 = vmatprep.subr.mxu0 0.0
        %2105 = vmatpush2.msra.mxu0 0.0
        %2106 = vmatprep.subr.mxu0 0.0
        %2107 = vmatpush2.msra.mxu0 0.0
        %2108 = vmatprep.subr.mxu0 0.0
        %2109 = vmatpush2.msra.mxu0 0.0
        %2110 = vmatprep.subr.mxu0 0.0
        %2111 = vmatpush2.msra.mxu0 0.0
        %2112 = vmatprep.subr.mxu0 0.0
        %2113 = vmatpush2.msra.mxu0 0.0
        %2114 = vmatprep.subr.mxu0 0.0
        %2115 = vmatpush2.msra.mxu0 0.0
        %2116 = vmatprep.subr.mxu0 0.0
        %2117 = vmatpush2.msra.mxu0 0.0
        %2118 = vmatprep.subr.mxu0 0.0
        %2119 = vmatpush2.msra.mxu0 0.0
        %2120 = vmatprep.subr.mxu0 0.0
        %2121 = vmatpush2.msra.mxu0 0.0
        %2122 = vmatprep.subr.mxu0 0.0
        %2123 = vmatpush2.msra.mxu0 0.0
        %2124 = vmatprep.subr.mxu0 0.0
        %2125 = vmatpush2.msra.mxu0 0.0
        %2126 = vmatprep.subr.mxu0 0.0
        %2127 = vmatpush2.msra.mxu0 0.0
        %2128 = vmatprep.subr.mxu0 0.0
        %2129 = vmatpush2.msra.mxu0 0.0
        %2130 = vmatprep.subr.mxu0 0.0
        %2131 = vmatpush2.msra.mxu0 0.0
        %2132 = vmatprep.subr.mxu0 0.0
        %2133 = vmatpush2.msra.mxu0 0.0
        %2134 = vmatprep.subr.mxu0 0.0
        %2135 = vmatpush2.msra.mxu0 0.0
        %2136 = vmatprep.mubr.f32.mxu0 0.0
        %2137 = vmatmul.mubr.f32.gmra.mxu0 %v2017
        %v2138 = vpop.f32.mrf.mxu0
        %v2139 = vadd.f32 %v2070, %v2138
        %v2140 = vpop.f32.mrf.mxu0
        %2141 = vmatprep.mubr.f32.mxu0 0.0
        %2142 = vmatmul.mubr.f32.gmra.mxu0 %v2018
        %v2143 = vpop.f32.mrf.mxu0
        %v2144 = vadd.f32 %v2070, %v2143
        %v2145 = vpop.f32.mrf.mxu0
        %2146 = vmatprep.mubr.f32.mxu0 0.0
        %2147 = vmatmul.mubr.f32.gmra.mxu0 %v2019
        %v2148 = vpop.f32.mrf.mxu0
        %v2149 = vadd.f32 %v2070, %v2148
        %v2150 = vpop.f32.mrf.mxu0
        %2151 = vmatprep.mubr.f32.mxu0 0.0
        %2152 = vmatmul.mubr.f32.gmra.mxu0 %v2020
        %v2153 = vpop.f32.mrf.mxu0
        %v2154 = vadd.f32 %v2070, %v2153
        %v2155 = vpop.f32.mrf.mxu0
        %2156 = vmatprep.mubr.f32.mxu0 0.0
        %2157 = vmatmul.mubr.f32.gmra.mxu0 %v2021
        %v2158 = vpop.f32.mrf.mxu0
        %v2159 = vadd.f32 %v2070, %v2158
        %v2160 = vpop.f32.mrf.mxu0
        %2161 = vmatprep.mubr.f32.mxu0 0.0
        %2162 = vmatmul.mubr.f32.gmra.mxu0 %v2022
        %v2163 = vpop.f32.mrf.mxu0
        %v2164 = vadd.f32 %v2070, %v2163
        %v2165 = vpop.f32.mrf.mxu0
        %2166 = vmatprep.mubr.f32.mxu0 0.0
        %2167 = vmatmul.mubr.f32.gmra.mxu0 %v2023
        %v2168 = vpop.f32.mrf.mxu0
        %v2169 = vadd.f32 %v2070, %v2168
        %v2170 = vpop.f32.mrf.mxu0
        %2171 = vmatprep.mubr.f32.mxu0 0.0
        %2172 = vmatmul.mubr.f32.gmra.mxu0 %v2024
        %v2173 = vpop.f32.mrf.mxu0
        %v2174 = vadd.f32 %v2070, %v2173
        %v2175 = vpop.f32.mrf.mxu0
        %2176 = vmatprep.mubr.f32.mxu0 0.0
        %2177 = vmatmul.mubr.f32.gmra.mxu0 %v2025
        %v2178 = vpop.f32.mrf.mxu0
        %v2179 = vadd.f32 %v2070, %v2178
        %v2180 = vpop.f32.mrf.mxu0
        %2181 = vmatprep.mubr.f32.mxu0 0.0
        %2182 = vmatmul.mubr.f32.gmra.mxu0 %v2026
        %v2183 = vpop.f32.mrf.mxu0
        %v2184 = vadd.f32 %v2070, %v2183
        %v2185 = vpop.f32.mrf.mxu0
        %2186 = vmatprep.mubr.f32.mxu0 0.0
        %2187 = vmatmul.mubr.f32.gmra.mxu0 %v2027
        %v2188 = vpop.f32.mrf.mxu0
        %v2189 = vadd.f32 %v2070, %v2188
        %v2190 = vpop.f32.mrf.mxu0
        %2191 = vmatprep.mubr.f32.mxu0 0.0
        %2192 = vmatmul.mubr.f32.gmra.mxu0 %v2028
        %v2193 = vpop.f32.mrf.mxu0
        %v2194 = vadd.f32 %v2070, %v2193
        %v2195 = vpop.f32.mrf.mxu0
        %2196 = vmatprep.mubr.f32.mxu0 0.0
        %2197 = vmatmul.mubr.f32.gmra.mxu0 %v2029
        %v2198 = vpop.f32.mrf.mxu0
        %v2199 = vadd.f32 %v2070, %v2198
        %v2200 = vpop.f32.mrf.mxu0
        %2201 = vmatprep.mubr.f32.mxu0 0.0
        %2202 = vmatmul.mubr.f32.gmra.mxu0 %v2030
        %v2203 = vpop.f32.mrf.mxu0
        %v2204 = vadd.f32 %v2070, %v2203
        %v2205 = vpop.f32.mrf.mxu0
        %2206 = vmatprep.mubr.f32.mxu0 0.0
        %2207 = vmatmul.mubr.f32.gmra.mxu0 %v2031
        %v2208 = vpop.f32.mrf.mxu0
        %v2209 = vadd.f32 %v2070, %v2208
        %v2210 = vpop.f32.mrf.mxu0
        %2211 = vmatprep.mubr.f32.mxu0 0.0
        %2212 = vmatmul.mubr.f32.gmra.mxu0 %v2032
        %v2213 = vpop.f32.mrf.mxu0
        %v2214 = vadd.f32 %v2070, %v2213
        %v2215 = vpop.f32.mrf.mxu0
        %2216 = vmatprep.mubr.f32.mxu0 0.0
        %2217 = vmatmul.mubr.f32.gmra.mxu0 %v2033
        %v2218 = vpop.f32.mrf.mxu0
        %v2219 = vadd.f32 %v2070, %v2218
        %v2220 = vpop.f32.mrf.mxu0
        %2221 = vmatprep.mubr.f32.mxu0 0.0
        %2222 = vmatmul.mubr.f32.gmra.mxu0 %v2034
        %v2223 = vpop.f32.mrf.mxu0
        %v2224 = vadd.f32 %v2070, %v2223
        %v2225 = vpop.f32.mrf.mxu0
        %2226 = vmatprep.mubr.f32.mxu0 0.0
        %2227 = vmatmul.mubr.f32.gmra.mxu0 %v2035
        %v2228 = vpop.f32.mrf.mxu0
        %v2229 = vadd.f32 %v2070, %v2228
        %v2230 = vpop.f32.mrf.mxu0
        %2231 = vmatprep.mubr.f32.mxu0 0.0
        %2232 = vmatmul.mubr.f32.gmra.mxu0 %v2036
        %v2233 = vpop.f32.mrf.mxu0
        %v2234 = vadd.f32 %v2070, %v2233
        %v2235 = vpop.f32.mrf.mxu0
        %2236 = vmatprep.mubr.f32.mxu0 0.0
        %2237 = vmatmul.mubr.f32.gmra.mxu0 %v2037
        %v2238 = vpop.f32.mrf.mxu0
        %v2239 = vadd.f32 %v2070, %v2238
        %v2240 = vpop.f32.mrf.mxu0
        %2241 = vmatprep.mubr.f32.mxu0 0.0
        %2242 = vmatmul.mubr.f32.gmra.mxu0 %v2038
        %v2243 = vpop.f32.mrf.mxu0
        %v2244 = vadd.f32 %v2070, %v2243
        %v2245 = vpop.f32.mrf.mxu0
        %2246 = vmatprep.mubr.f32.mxu0 0.0
        %2247 = vmatmul.mubr.f32.gmra.mxu0 %v2039
        %v2248 = vpop.f32.mrf.mxu0
        %v2249 = vadd.f32 %v2070, %v2248
        %v2250 = vpop.f32.mrf.mxu0
        %2251 = vmatprep.mubr.f32.mxu0 0.0
        %2252 = vmatmul.mubr.f32.gmra.mxu0 %v2040
        %v2253 = vpop.f32.mrf.mxu0
        %v2254 = vadd.f32 %v2070, %v2253
        %v2255 = vpop.f32.mrf.mxu0
        %2256 = vmatprep.mubr.f32.mxu0 0.0
        %2257 = vmatmul.mubr.f32.gmra.mxu0 %v2041
        %v2258 = vpop.f32.mrf.mxu0
        %v2259 = vadd.f32 %v2070, %v2258
        %v2260 = vpop.f32.mrf.mxu0
        %2261 = vmatprep.mubr.f32.mxu0 0.0
        %2262 = vmatmul.mubr.f32.gmra.mxu0 %v2042
        %v2263 = vpop.f32.mrf.mxu0
        %v2264 = vadd.f32 %v2070, %v2263
        %v2265 = vpop.f32.mrf.mxu0
        %2266 = vmatprep.mubr.f32.mxu0 0.0
        %2267 = vmatmul.mubr.f32.gmra.mxu0 %v2043
        %v2268 = vpop.f32.mrf.mxu0
        %v2269 = vadd.f32 %v2070, %v2268
        %v2270 = vpop.f32.mrf.mxu0
        %2271 = vmatprep.mubr.f32.mxu0 0.0
        %2272 = vmatmul.mubr.f32.gmra.mxu0 %v2044
        %v2273 = vpop.f32.mrf.mxu0
        %v2274 = vadd.f32 %v2070, %v2273
        %v2275 = vpop.f32.mrf.mxu0
        %2276 = vmatprep.mubr.f32.mxu0 0.0
        %2277 = vmatmul.mubr.f32.gmra.mxu0 %v2045
        %v2278 = vpop.f32.mrf.mxu0
        %v2279 = vadd.f32 %v2070, %v2278
        %v2280 = vpop.f32.mrf.mxu0
        %2281 = vmatprep.mubr.f32.mxu0 0.0
        %2282 = vmatmul.mubr.f32.gmra.mxu0 %v2046
        %v2283 = vpop.f32.mrf.mxu0
        %v2284 = vadd.f32 %v2070, %v2283
        %v2285 = vpop.f32.mrf.mxu0
        %2286 = vmatprep.mubr.f32.mxu0 0.0
        %2287 = vmatmul.mubr.f32.gmra.mxu0 %v2047
        %v2288 = vpop.f32.mrf.mxu0
        %v2289 = vadd.f32 %v2070, %v2288
        %v2290 = vpop.f32.mrf.mxu0
        %2291 = vmatprep.mubr.f32.mxu0 0.0
        %2292 = vmatmul.mubr.f32.gmra.mxu0 %v2048
        %v2293 = vpop.f32.mrf.mxu0
        %v2294 = vadd.f32 %v2070, %v2293
        %v2295 = vpop.f32.mrf.mxu0
        %2296 = vdwg.mxu0
        %v2297 = vmax.f32 %v2139, 0.0
        %v2298 = vmax.f32 %v2144, 0.0
        %v2299 = vmax.f32 %v2149, 0.0
        %v2300 = vmax.f32 %v2154, 0.0
        %v2301 = vmax.f32 %v2159, 0.0
        %v2302 = vmax.f32 %v2164, 0.0
        %v2303 = vmax.f32 %v2169, 0.0
        %v2304 = vmax.f32 %v2174, 0.0
        %v2305 = vmax.f32 %v2179, 0.0
        %v2306 = vmax.f32 %v2184, 0.0
        %v2307 = vmax.f32 %v2189, 0.0
        %v2308 = vmax.f32 %v2194, 0.0
        %v2309 = vmax.f32 %v2199, 0.0
        %v2310 = vmax.f32 %v2204, 0.0
        %v2311 = vmax.f32 %v2209, 0.0
        %v2312 = vmax.f32 %v2214, 0.0
        %v2313 = vmax.f32 %v2219, 0.0
        %v2314 = vmax.f32 %v2224, 0.0
        %v2315 = vmax.f32 %v2229, 0.0
        %v2316 = vmax.f32 %v2234, 0.0
        %v2317 = vmax.f32 %v2239, 0.0
        %v2318 = vmax.f32 %v2244, 0.0
        %v2319 = vmax.f32 %v2249, 0.0
        %v2320 = vmax.f32 %v2254, 0.0
        %v2321 = vmax.f32 %v2259, 0.0
        %v2322 = vmax.f32 %v2264, 0.0
        %v2323 = vmax.f32 %v2269, 0.0
        %v2324 = vmax.f32 %v2274, 0.0
        %v2325 = vmax.f32 %v2279, 0.0
        %v2326 = vmax.f32 %v2284, 0.0
        %v2327 = vmax.f32 %v2289, 0.0
        %v2328 = vmax.f32 %v2294, 0.0
        %v2329 = vld [vmem:[#allocation14] sm:$0xff]
        %v2330 = vld [vmem:[#allocation14 + $0x8] sm:$0xff]
        %v2331 = vld [vmem:[#allocation14 + $0x10] sm:$0xff]
        %v2332 = vld [vmem:[#allocation14 + $0x18] sm:$0xff]
        %v2333 = vld [vmem:[#allocation14 + $0x20] sm:$0xff]
        %v2334 = vld [vmem:[#allocation14 + $0x28] sm:$0xff]
        %v2335 = vld [vmem:[#allocation14 + $0x30] sm:$0xff]
        %v2336 = vld [vmem:[#allocation14 + $0x38] sm:$0xff]
        %v2337 = vld [vmem:[#allocation14 + $0x40] sm:$0xff]
        %v2338 = vld [vmem:[#allocation14 + $0x48] sm:$0xff]
        %v2339 = vld [vmem:[#allocation14 + $0x50] sm:$0xff]
        %v2340 = vld [vmem:[#allocation14 + $0x58] sm:$0xff]
        %v2341 = vld [vmem:[#allocation14 + $0x60] sm:$0xff]
        %v2342 = vld [vmem:[#allocation14 + $0x68] sm:$0xff]
        %v2343 = vld [vmem:[#allocation14 + $0x70] sm:$0xff]
        %v2344 = vld [vmem:[#allocation14 + $0x78] sm:$0xff]
        %v2345 = vld [vmem:[%s14] sm:$0x1]
        %v2347 = vlaneseq
        %v2348 = vshrl.u32 %v2347, 7
        %v2349 = vsub.s32 0, %v2348
        %v2350 = vrot.slane %v2345, %v2349
        %2352 = vmatprep.subr.mxu0 0.0
        %2353 = vmatpush1.msra.mxu0 %v2344
        %2354 = vmatprep.subr.mxu0 0.0
        %2355 = vmatpush1.msra.mxu0 %v2343
        %2356 = vmatprep.subr.mxu0 0.0
        %2357 = vmatpush1.msra.mxu0 %v2342
        %2358 = vmatprep.subr.mxu0 0.0
        %2359 = vmatpush1.msra.mxu0 %v2341
        %2360 = vmatprep.subr.mxu0 0.0
        %2361 = vmatpush1.msra.mxu0 %v2340
        %2362 = vmatprep.subr.mxu0 0.0
        %2363 = vmatpush1.msra.mxu0 %v2339
        %2364 = vmatprep.subr.mxu0 0.0
        %2365 = vmatpush1.msra.mxu0 %v2338
        %2366 = vmatprep.subr.mxu0 0.0
        %2367 = vmatpush1.msra.mxu0 %v2337
        %2368 = vmatprep.subr.mxu0 0.0
        %2369 = vmatpush1.msra.mxu0 %v2336
        %2370 = vmatprep.subr.mxu0 0.0
        %2371 = vmatpush1.msra.mxu0 %v2335
        %2372 = vmatprep.subr.mxu0 0.0
        %2373 = vmatpush1.msra.mxu0 %v2334
        %2374 = vmatprep.subr.mxu0 0.0
        %2375 = vmatpush1.msra.mxu0 %v2333
        %2376 = vmatprep.subr.mxu0 0.0
        %2377 = vmatpush1.msra.mxu0 %v2332
        %2378 = vmatprep.subr.mxu0 0.0
        %2379 = vmatpush1.msra.mxu0 %v2331
        %2380 = vmatprep.subr.mxu0 0.0
        %2381 = vmatpush1.msra.mxu0 %v2330
        %2382 = vmatprep.subr.mxu0 0.0
        %2383 = vmatpush1.msra.mxu0 %v2329
        %2384 = vmatprep.subr.mxu0 0.0
        %2385 = vmatpush2.msra.mxu0 0.0
        %2386 = vmatprep.subr.mxu0 0.0
        %2387 = vmatpush2.msra.mxu0 0.0
        %2388 = vmatprep.subr.mxu0 0.0
        %2389 = vmatpush2.msra.mxu0 0.0
        %2390 = vmatprep.subr.mxu0 0.0
        %2391 = vmatpush2.msra.mxu0 0.0
        %2392 = vmatprep.subr.mxu0 0.0
        %2393 = vmatpush2.msra.mxu0 0.0
        %2394 = vmatprep.subr.mxu0 0.0
        %2395 = vmatpush2.msra.mxu0 0.0
        %2396 = vmatprep.subr.mxu0 0.0
        %2397 = vmatpush2.msra.mxu0 0.0
        %2398 = vmatprep.subr.mxu0 0.0
        %2399 = vmatpush2.msra.mxu0 0.0
        %2400 = vmatprep.subr.mxu0 0.0
        %2401 = vmatpush2.msra.mxu0 0.0
        %2402 = vmatprep.subr.mxu0 0.0
        %2403 = vmatpush2.msra.mxu0 0.0
        %2404 = vmatprep.subr.mxu0 0.0
        %2405 = vmatpush2.msra.mxu0 0.0
        %2406 = vmatprep.subr.mxu0 0.0
        %2407 = vmatpush2.msra.mxu0 0.0
        %2408 = vmatprep.subr.mxu0 0.0
        %2409 = vmatpush2.msra.mxu0 0.0
        %2410 = vmatprep.subr.mxu0 0.0
        %2411 = vmatpush2.msra.mxu0 0.0
        %2412 = vmatprep.subr.mxu0 0.0
        %2413 = vmatpush2.msra.mxu0 0.0
        %2414 = vmatprep.subr.mxu0 0.0
        %2415 = vmatpush2.msra.mxu0 0.0
        %2416 = vmatprep.mubr.f32.mxu0 0.0
        %2417 = vmatmul.mubr.f32.gmra.mxu0 %v2297
        %v2418 = vpop.f32.mrf.mxu0
        %v2419 = vadd.f32 %v2350, %v2418
        %v2420 = vpop.f32.mrf.mxu0
        %2421 = vmatprep.mubr.f32.mxu0 0.0
        %2422 = vmatmul.mubr.f32.gmra.mxu0 %v2298
        %v2423 = vpop.f32.mrf.mxu0
        %v2424 = vadd.f32 %v2350, %v2423
        %v2425 = vpop.f32.mrf.mxu0
        %2426 = vmatprep.mubr.f32.mxu0 0.0
        %2427 = vmatmul.mubr.f32.gmra.mxu0 %v2299
        %v2428 = vpop.f32.mrf.mxu0
        %v2429 = vadd.f32 %v2350, %v2428
        %v2430 = vpop.f32.mrf.mxu0
        %2431 = vmatprep.mubr.f32.mxu0 0.0
        %2432 = vmatmul.mubr.f32.gmra.mxu0 %v2300
        %v2433 = vpop.f32.mrf.mxu0
        %v2434 = vadd.f32 %v2350, %v2433
        %v2435 = vpop.f32.mrf.mxu0
        %2436 = vmatprep.mubr.f32.mxu0 0.0
        %2437 = vmatmul.mubr.f32.gmra.mxu0 %v2301
        %v2438 = vpop.f32.mrf.mxu0
        %v2439 = vadd.f32 %v2350, %v2438
        %v2440 = vpop.f32.mrf.mxu0
        %2441 = vmatprep.mubr.f32.mxu0 0.0
        %2442 = vmatmul.mubr.f32.gmra.mxu0 %v2302
        %v2443 = vpop.f32.mrf.mxu0
        %v2444 = vadd.f32 %v2350, %v2443
        %v2445 = vpop.f32.mrf.mxu0
        %2446 = vmatprep.mubr.f32.mxu0 0.0
        %2447 = vmatmul.mubr.f32.gmra.mxu0 %v2303
        %v2448 = vpop.f32.mrf.mxu0
        %v2449 = vadd.f32 %v2350, %v2448
        %v2450 = vpop.f32.mrf.mxu0
        %2451 = vmatprep.mubr.f32.mxu0 0.0
        %2452 = vmatmul.mubr.f32.gmra.mxu0 %v2304
        %v2453 = vpop.f32.mrf.mxu0
        %v2454 = vadd.f32 %v2350, %v2453
        %v2455 = vpop.f32.mrf.mxu0
        %2456 = vmatprep.mubr.f32.mxu0 0.0
        %2457 = vmatmul.mubr.f32.gmra.mxu0 %v2305
        %v2458 = vpop.f32.mrf.mxu0
        %v2459 = vadd.f32 %v2350, %v2458
        %v2460 = vpop.f32.mrf.mxu0
        %2461 = vmatprep.mubr.f32.mxu0 0.0
        %2462 = vmatmul.mubr.f32.gmra.mxu0 %v2306
        %v2463 = vpop.f32.mrf.mxu0
        %v2464 = vadd.f32 %v2350, %v2463
        %v2465 = vpop.f32.mrf.mxu0
        %2466 = vmatprep.mubr.f32.mxu0 0.0
        %2467 = vmatmul.mubr.f32.gmra.mxu0 %v2307
        %v2468 = vpop.f32.mrf.mxu0
        %v2469 = vadd.f32 %v2350, %v2468
        %v2470 = vpop.f32.mrf.mxu0
        %2471 = vmatprep.mubr.f32.mxu0 0.0
        %2472 = vmatmul.mubr.f32.gmra.mxu0 %v2308
        %v2473 = vpop.f32.mrf.mxu0
        %v2474 = vadd.f32 %v2350, %v2473
        %v2475 = vpop.f32.mrf.mxu0
        %2476 = vmatprep.mubr.f32.mxu0 0.0
        %2477 = vmatmul.mubr.f32.gmra.mxu0 %v2309
        %v2478 = vpop.f32.mrf.mxu0
        %v2479 = vadd.f32 %v2350, %v2478
        %v2480 = vpop.f32.mrf.mxu0
        %2481 = vmatprep.mubr.f32.mxu0 0.0
        %2482 = vmatmul.mubr.f32.gmra.mxu0 %v2310
        %v2483 = vpop.f32.mrf.mxu0
        %v2484 = vadd.f32 %v2350, %v2483
        %v2485 = vpop.f32.mrf.mxu0
        %2486 = vmatprep.mubr.f32.mxu0 0.0
        %2487 = vmatmul.mubr.f32.gmra.mxu0 %v2311
        %v2488 = vpop.f32.mrf.mxu0
        %v2489 = vadd.f32 %v2350, %v2488
        %v2490 = vpop.f32.mrf.mxu0
        %2491 = vmatprep.mubr.f32.mxu0 0.0
        %2492 = vmatmul.mubr.f32.gmra.mxu0 %v2312
        %v2493 = vpop.f32.mrf.mxu0
        %v2494 = vadd.f32 %v2350, %v2493
        %v2495 = vpop.f32.mrf.mxu0
        %2496 = vmatprep.mubr.f32.mxu0 0.0
        %2497 = vmatmul.mubr.f32.gmra.mxu0 %v2313
        %v2498 = vpop.f32.mrf.mxu0
        %v2499 = vadd.f32 %v2350, %v2498
        %v2500 = vpop.f32.mrf.mxu0
        %2501 = vmatprep.mubr.f32.mxu0 0.0
        %2502 = vmatmul.mubr.f32.gmra.mxu0 %v2314
        %v2503 = vpop.f32.mrf.mxu0
        %v2504 = vadd.f32 %v2350, %v2503
        %v2505 = vpop.f32.mrf.mxu0
        %2506 = vmatprep.mubr.f32.mxu0 0.0
        %2507 = vmatmul.mubr.f32.gmra.mxu0 %v2315
        %v2508 = vpop.f32.mrf.mxu0
        %v2509 = vadd.f32 %v2350, %v2508
        %v2510 = vpop.f32.mrf.mxu0
        %2511 = vmatprep.mubr.f32.mxu0 0.0
        %2512 = vmatmul.mubr.f32.gmra.mxu0 %v2316
        %v2513 = vpop.f32.mrf.mxu0
        %v2514 = vadd.f32 %v2350, %v2513
        %v2515 = vpop.f32.mrf.mxu0
        %2516 = vmatprep.mubr.f32.mxu0 0.0
        %2517 = vmatmul.mubr.f32.gmra.mxu0 %v2317
        %v2518 = vpop.f32.mrf.mxu0
        %v2519 = vadd.f32 %v2350, %v2518
        %v2520 = vpop.f32.mrf.mxu0
        %2521 = vmatprep.mubr.f32.mxu0 0.0
        %2522 = vmatmul.mubr.f32.gmra.mxu0 %v2318
        %v2523 = vpop.f32.mrf.mxu0
        %v2524 = vadd.f32 %v2350, %v2523
        %v2525 = vpop.f32.mrf.mxu0
        %2526 = vmatprep.mubr.f32.mxu0 0.0
        %2527 = vmatmul.mubr.f32.gmra.mxu0 %v2319
        %v2528 = vpop.f32.mrf.mxu0
        %v2529 = vadd.f32 %v2350, %v2528
        %v2530 = vpop.f32.mrf.mxu0
        %2531 = vmatprep.mubr.f32.mxu0 0.0
        %2532 = vmatmul.mubr.f32.gmra.mxu0 %v2320
        %v2533 = vpop.f32.mrf.mxu0
        %v2534 = vadd.f32 %v2350, %v2533
        %v2535 = vpop.f32.mrf.mxu0
        %2536 = vmatprep.mubr.f32.mxu0 0.0
        %2537 = vmatmul.mubr.f32.gmra.mxu0 %v2321
        %v2538 = vpop.f32.mrf.mxu0
        %v2539 = vadd.f32 %v2350, %v2538
        %v2540 = vpop.f32.mrf.mxu0
        %2541 = vmatprep.mubr.f32.mxu0 0.0
        %2542 = vmatmul.mubr.f32.gmra.mxu0 %v2322
        %v2543 = vpop.f32.mrf.mxu0
        %v2544 = vadd.f32 %v2350, %v2543
        %v2545 = vpop.f32.mrf.mxu0
        %2546 = vmatprep.mubr.f32.mxu0 0.0
        %2547 = vmatmul.mubr.f32.gmra.mxu0 %v2323
        %v2548 = vpop.f32.mrf.mxu0
        %v2549 = vadd.f32 %v2350, %v2548
        %v2550 = vpop.f32.mrf.mxu0
        %2551 = vmatprep.mubr.f32.mxu0 0.0
        %2552 = vmatmul.mubr.f32.gmra.mxu0 %v2324
        %v2553 = vpop.f32.mrf.mxu0
        %v2554 = vadd.f32 %v2350, %v2553
        %v2555 = vpop.f32.mrf.mxu0
        %2556 = vmatprep.mubr.f32.mxu0 0.0
        %2557 = vmatmul.mubr.f32.gmra.mxu0 %v2325
        %v2558 = vpop.f32.mrf.mxu0
        %v2559 = vadd.f32 %v2350, %v2558
        %v2560 = vpop.f32.mrf.mxu0
        %2561 = vmatprep.mubr.f32.mxu0 0.0
        %2562 = vmatmul.mubr.f32.gmra.mxu0 %v2326
        %v2563 = vpop.f32.mrf.mxu0
        %v2564 = vadd.f32 %v2350, %v2563
        %v2565 = vpop.f32.mrf.mxu0
        %2566 = vmatprep.mubr.f32.mxu0 0.0
        %2567 = vmatmul.mubr.f32.gmra.mxu0 %v2327
        %v2568 = vpop.f32.mrf.mxu0
        %v2569 = vadd.f32 %v2350, %v2568
        %v2570 = vpop.f32.mrf.mxu0
        %2571 = vmatprep.mubr.f32.mxu0 0.0
        %2572 = vmatmul.mubr.f32.gmra.mxu0 %v2328
        %v2573 = vpop.f32.mrf.mxu0
        %v2574 = vadd.f32 %v2350, %v2573
        %v2575 = vpop.f32.mrf.mxu0
        %2576 = vdwg.mxu0
        %2577 = vst [vmem:[%s614] sm:$0xff] %v2419
        %2578 = vst [vmem:[%s614 + $0x8] sm:$0xff] %v2424
        %2579 = vst [vmem:[%s614 + $0x10] sm:$0xff] %v2429
        %2580 = vst [vmem:[%s614 + $0x18] sm:$0xff] %v2434
        %2581 = vst [vmem:[%s614 + $0x20] sm:$0xff] %v2439
        %2582 = vst [vmem:[%s614 + $0x28] sm:$0xff] %v2444
        %2583 = vst [vmem:[%s614 + $0x30] sm:$0xff] %v2449
        %2584 = vst [vmem:[%s614 + $0x38] sm:$0xff] %v2454
        %2585 = vst [vmem:[%s614 + $0x40] sm:$0xff] %v2459
        %2586 = vst [vmem:[%s614 + $0x48] sm:$0xff] %v2464
        %2587 = vst [vmem:[%s614 + $0x50] sm:$0xff] %v2469
        %2588 = vst [vmem:[%s614 + $0x58] sm:$0xff] %v2474
        %2589 = vst [vmem:[%s614 + $0x60] sm:$0xff] %v2479
        %2590 = vst [vmem:[%s614 + $0x68] sm:$0xff] %v2484
        %2591 = vst [vmem:[%s614 + $0x70] sm:$0xff] %v2489
        %2592 = vst [vmem:[%s614 + $0x78] sm:$0xff] %v2494
        %2593 = vst [vmem:[%s614 + $0x80] sm:$0xff] %v2499
        %2594 = vst [vmem:[%s614 + $0x88] sm:$0xff] %v2504
        %2595 = vst [vmem:[%s614 + $0x90] sm:$0xff] %v2509
        %2596 = vst [vmem:[%s614 + $0x98] sm:$0xff] %v2514
        %2597 = vst [vmem:[%s614 + $0xa0] sm:$0xff] %v2519
        %2598 = vst [vmem:[%s614 + $0xa8] sm:$0xff] %v2524
        %2599 = vst [vmem:[%s614 + $0xb0] sm:$0xff] %v2529
        %2600 = vst [vmem:[%s614 + $0xb8] sm:$0xff] %v2534
        %2601 = vst [vmem:[%s614 + $0xc0] sm:$0xff] %v2539
        %2602 = vst [vmem:[%s614 + $0xc8] sm:$0xff] %v2544
        %2603 = vst [vmem:[%s614 + $0xd0] sm:$0xff] %v2549
        %2604 = vst [vmem:[%s614 + $0xd8] sm:$0xff] %v2554
        %2605 = vst [vmem:[%s614 + $0xe0] sm:$0xff] %v2559
        %2606 = vst [vmem:[%s614 + $0xe8] sm:$0xff] %v2564
        %2607 = vst [vmem:[%s614 + $0xf0] sm:$0xff] %v2569
        %2608 = vst [vmem:[%s614 + $0xf8] sm:$0xff] %v2574
        %s2609 = sand.u32 %s364, 1
        %s2610 = scalar_lea.sflag [#allocation4], %s2609
        %s2611 = sand.u32 %s364, 1
        %s2612 = smul.addr %s2611, 256
        %s2613 = scalar_lea.vmem [#allocation16], %s2612
        // Predicated region
        $region113: #{tpu_custom_call.1} parent=79 // pred_check
          %p2614 = pneg %p374
        $region114: #{tpu_custom_call.1} parent=79 // pred_check_branch
          %2616 = sbr.rel (%p2614) target = $region116
        $region115: #{tpu_custom_call.1} parent=79 // pred_region
          %s2617 = smul.u32 32, %s36
          %s2619 = ssub.s32 4096, 4096
          %2620 = vsyncadd %s2610, %s2619
          %s2621 = smul.addr %s2617, 128
          %s2622 = scalar_lea.hbm %s15, %s2621
          %s2623 = sshll.u32 %s2613, 4
          %s2624 = int_to_ptr.vmem [resolvable:$true] %s2623
          %2629 = dma.vmem_to_hbm [thread:$0]  %s2624, 4096, %s2622, %s2610, 128, 128, 8
        $region116: #{tpu_custom_call.1} parent=79 // pred_fallthru
          _
      $region80: #{tpu_custom_call.1} parent=5 // pred_fallthru
        _
      %p2630 = scmp.le.s32.totalorder 2, %s31
      // Predicated region
      $region117: #{tpu_custom_call.1} parent=5 // pred_check
        %p2631 = pneg %p2630
      $region118: #{tpu_custom_call.1} parent=5 // pred_check_branch
        %2633 = sbr.rel (%p2631) target = $region120
      $region119: #{tpu_custom_call.1} parent=5 // pred_region
        %s2634 = ssub.s32 %s31, 2
        // Predicated region
        $region121: #{tpu_custom_call.1} parent=119 // pred_check
          %p2635 = pneg %p380
        $region122: #{tpu_custom_call.1} parent=119 // pred_check_branch
          %2637 = sbr.rel (%p2635) target = $region124
        $region123: #{tpu_custom_call.1} parent=119 // pred_region
          %s2638 = sand.u32 %s365, 1
          %s2639 = scalar_lea.sflag [#allocation4], %s2638
          %s2640 = sand.u32 %s365, 1
          %s2641 = smul.addr %s2640, 256
          %s2642 = scalar_lea.vmem [#allocation16], %s2641
          %2643 = dma.done %s2639, 4096
        $region124: #{tpu_custom_call.1} parent=119 // pred_fallthru
          _
      $region120: #{tpu_custom_call.1} parent=5 // pred_fallthru
        _
    $region6: #{tpu_custom_call.1} parent=1 // loop_footer
      %s35 = sadd.s32 1, %s31
    $region7: #{tpu_custom_call.1} parent=1 // loop_footer_branch
      %30 = sbr.rel target = $region3
    $region8: #{tpu_custom_call.1} parent=1 // loop_exit
      _
    %2644 = vsyncpa [#allocation3], 1
    %s2645 = scalar_lea.sflag [#allocation3], 1
    %2646 = vsyncpa %s2645, 1
    %2647 = vsyncpa [#allocation6], 1
    %2648 = vsyncpa [#allocation9], 1
    %2649 = vsyncpa [#allocation12], 1
    %2650 = vsyncpa [#allocation15], 1
    %2651 = vsyncpa [#allocation4], 1
    %s2652 = scalar_lea.sflag [#allocation4], 1
    %2653 = vsyncpa %s2652, 1

</llo_original>
